<compile_context>
chip_gen: v7x
topology: tpu7x:2x2x1
jax: 0.10.0
libtpu: 0.0.40
codegen_flags: <defaults>
</compile_context>

<pallas_src>
import functools

import jax
import jax.numpy as jnp
from jax.experimental import pallas as pl
from jax.experimental.pallas import tpu as pltpu


_W_NAMES = ('wq', 'wk', 'wv', 'wo', 'w1', 'w2')          # fed in compute dtype (bf16)
_P_ORDER = ('wq', 'wk', 'wv', 'wo', 'w1', 'b1', 'w2', 'b2',
            'ln1_g', 'ln1_b', 'ln2_g', 'ln2_b')


# ----------------------------- Pallas kernel -------------------------------

def fused_encoder_kernel(x_ref, wq_ref, wk_ref, wv_ref, wo_ref,
                         w1_ref, b1_ref, w2_ref, b2_ref,
                         ln1_g_ref, ln1_b_ref, ln2_g_ref, ln2_b_ref,
                         o_ref, *, heads_num, seq_len, compute_dtype):
    """Grid = (batch_block i, layer l). o_ref is the resident activation carry."""
    l = pl.program_id(1)

    # Layer 0: seed the resident activation from the embedded input.
    @pl.when(l == 0)
    def _():
        o_ref[...] = x_ref[...]

    R, D = o_ref.shape                      # R = bb * S rows, D lanes
    S = seq_len
    bb = R // S
    H = heads_num
    K = D // H
    scale = 1.0 / float(K) ** 0.5
    cdt = compute_dtype

    x2 = o_ref[...].astype(jnp.float32)     # (R, D) f32 activation slab
    xc = x2.astype(cdt)

    wq = wq_ref[0]
    wk = wk_ref[0]
    wv = wv_ref[0]
    wo = wo_ref[0]

    # --- fused QKV projections (bf16 MXU, f32 accumulate); scale folded into q ---
    q = jnp.dot(xc, wq, preferred_element_type=jnp.float32) * scale
    k = jnp.dot(xc, wk, preferred_element_type=jnp.float32)
    v = jnp.dot(xc, wv, preferred_element_type=jnp.float32)

    # --- heads-batched self-attention ---
    # Build a head-major (H*bb, S, K) batch once per tensor (static lane slices
    # + leading-axis concat), then run the score / softmax / AV matmuls as
    # single batched einsums instead of a per-head loop of tiny matmuls.
    def split_heads(t):                                    # t: (R, D) f32
        parts = [t[:, h * K:(h + 1) * K].reshape(1, bb, S, K) for h in range(H)]
        return jnp.concatenate(parts, axis=0).reshape(H * bb, S, K)

    qh = split_heads(q).astype(cdt)
    kh = split_heads(k).astype(cdt)
    vh = split_heads(v).astype(cdt)

    s = jnp.einsum('nqk,ntk->nqt', qh, kh,
                   preferred_element_type=jnp.float32)     # (H*bb, S, S)
    s = s - jnp.max(s, axis=-1, keepdims=True)
    p = jnp.exp(s)
    p = p * pl.reciprocal(jnp.sum(p, axis=-1, keepdims=True), approx=True)
    o = jnp.einsum('nqt,ntk->nqk', p.astype(cdt), vh,
                   preferred_element_type=jnp.float32)     # (H*bb, S, K)

    # Merge heads back to (R, D) lanes, then ONE W_O matmul.
    o = o.reshape(H, R, K)
    attn = jnp.concatenate([o[h] for h in range(H)], axis=-1)   # (R, D)
    attn_out = jnp.dot(attn.astype(cdt), wo,
                       preferred_element_type=jnp.float32)
    # dropout -> identity (eval mode)

    # --- add & layernorm 1 (f32) ---
    h1 = x2 + attn_out
    mu1 = jnp.mean(h1, axis=-1, keepdims=True)
    var1 = jnp.mean((h1 - mu1) ** 2, axis=-1, keepdims=True)
    h1n = (h1 - mu1) * jax.lax.rsqrt(var1 + 1e-5)
    h1n = h1n * ln1_g_ref[0] + ln1_b_ref[0]

    # --- feed forward ---
    ff = jnp.dot(h1n.astype(cdt), w1_ref[0],
                 preferred_element_type=jnp.float32) + b1_ref[0]
    ff = jnp.maximum(ff, 0.0)
    ff = jnp.dot(ff.astype(cdt), w2_ref[0],
                 preferred_element_type=jnp.float32) + b2_ref[0]

    # --- add & layernorm 2 ---
    h2 = h1n + ff
    mu2 = jnp.mean(h2, axis=-1, keepdims=True)
    var2 = jnp.mean((h2 - mu2) ** 2, axis=-1, keepdims=True)
    h2n = (h2 - mu2) * jax.lax.rsqrt(var2 + 1e-5)
    h2n = h2n * ln2_g_ref[0] + ln2_b_ref[0]

    # Dense 2-D slab store; HBM writeback happens once per batch block (output
    # block index is constant over the layer axis).
    o_ref[...] = h2n.astype(o_ref.dtype)


# ------------------------------ wrapper -------------------------------------

def _device_kind():
    try:
        return jax.devices()[0].device_kind.lower()
    except Exception:
        return ""


def stack_layer_params(layer_params, compute_dtype):
    stacked = {}
    for name in _P_ORDER:
        arr = jnp.stack([p[name] for p in layer_params], axis=0)
        if name in _W_NAMES:
            arr = arr.astype(compute_dtype)
        stacked[name] = arr
    return stacked


def encoder_layers_pallas(x, stacked, heads_num, *, batch_block=None,
                          compute_dtype=jnp.bfloat16):
    """x: (B, S, D) f32 embedded input; stacked: dict of (L, ...) params."""
    B, S, D = x.shape
    L = stacked['wq'].shape[0]
    DFF = stacked['w1'].shape[-1]
    kind = _device_kind()

    if batch_block is None:
        # v7x: 2 TensorCores -> give the parallel batch axis >=2 steps.
        # v5e/v6e: 1 TC -> single batch block, weights streamed from HBM once.
        n_blk = 2 if ('v7' in kind and B >= 2 and B % 2 == 0) else 1
        bb = B // n_blk
    else:
        bb = batch_block
    assert B % bb == 0

    # v7x has only 64 MiB physical VMEM per TC: leave headroom for Mosaic
    # scratch and double buffers. 64 MiB is fine on v5e/v6e (128 MiB physical).
    vmem_limit = (48 if 'v7' in kind else 64) * 1024 * 1024

    kernel = functools.partial(fused_encoder_kernel, heads_num=heads_num,
                               seq_len=S, compute_dtype=compute_dtype)

    def param_spec(arr):
        return pl.BlockSpec((1,) + arr.shape[1:], lambda i, l: (l, 0, 0))

    in_specs = ([pl.BlockSpec((bb * S, D), lambda i, l: (i, 0))]
                + [param_spec(stacked[name]) for name in _P_ORDER])

    # Advisory cost estimate so XLA overlaps the embedding gather / positional
    # add (and any surrounding collectives) with the long fused kernel.
    flops = 2 * L * B * S * (4 * D * D + 2 * S * D + 2 * D * DFF)
    transcendentals = L * B * heads_num * S * S
    w_bytes = sum(int(stacked[n].size) * stacked[n].dtype.itemsize for n in _P_ORDER)
    bytes_accessed = w_bytes + 2 * B * S * D * x.dtype.itemsize

    x2d = x.reshape(B * S, D)   # lane-dense slab; kernel never re-tiles rows
    out2d = pl.pallas_call(
        kernel,
        out_shape=jax.ShapeDtypeStruct((B * S, D), x.dtype),
        grid_spec=pltpu.PrefetchScalarGridSpec(
            num_scalar_prefetch=0,
            grid=(B // bb, L),
            in_specs=in_specs,
            out_specs=pl.BlockSpec((bb * S, D), lambda i, l: (i, 0)),
        ),
        compiler_params=pltpu.CompilerParams(
            dimension_semantics=("parallel", "arbitrary"),
            vmem_limit_bytes=vmem_limit,
        ),
        cost_estimate=pl.CostEstimate(flops=int(flops),
                                      transcendentals=int(transcendentals),
                                      bytes_accessed=int(bytes_accessed)),
    )(x2d, *[stacked[name] for name in _P_ORDER])
    return out2d.reshape(B, S, D)


# --------------------------- plain-JAX glue ---------------------------------

def make_position_encoding(d_model, max_seq_len):
    position = jnp.arange(max_seq_len, dtype=jnp.float32).reshape(-1, 1)
    weight = (1.0 / 10000.0 ** (jnp.arange(0, d_model, 2, dtype=jnp.float32)
                                / d_model)).reshape(1, -1)
    item = position * weight
    pe = jnp.zeros((max_seq_len, d_model), jnp.float32)
    pe = pe.at[:, 0::2].set(jnp.sin(item))
    pe = pe.at[:, 1::2].set(jnp.cos(item))
    return pe


def init_layer_params(key, d_model, d_ff):
    ks = jax.random.split(key, 6)
    s = 0.02
    return {
        'wq': s * jax.random.normal(ks[0], (d_model, d_model), jnp.float32),
        'wk': s * jax.random.normal(ks[1], (d_model, d_model), jnp.float32),
        'wv': s * jax.random.normal(ks[2], (d_model, d_model), jnp.float32),
        'wo': s * jax.random.normal(ks[3], (d_model, d_model), jnp.float32),
        'w1': s * jax.random.normal(ks[4], (d_model, d_ff), jnp.float32),
        'b1': jnp.zeros((1, d_ff), jnp.float32),
        'w2': s * jax.random.normal(ks[5], (d_ff, d_model), jnp.float32),
        'b2': jnp.zeros((1, d_model), jnp.float32),
        'ln1_g': jnp.ones((1, d_model), jnp.float32),
        'ln1_b': jnp.zeros((1, d_model), jnp.float32),
        'ln2_g': jnp.ones((1, d_model), jnp.float32),
        'ln2_b': jnp.zeros((1, d_model), jnp.float32),
    }


def encoder_forward(tokens, embedding, pos_encoding, layer_params, heads_num,
                    compute_dtype=jnp.bfloat16):
    # embedding lookup (gather) + positional encoding add: JAX glue
    x = jnp.take(embedding, tokens, axis=0)                    # (B, S, D)
    S = tokens.shape[1]
    x = x + pos_encoding[None, :S, :]
    stacked = stack_layer_params(layer_params, compute_dtype)
    return encoder_layers_pallas(x, stacked, heads_num,
                                 compute_dtype=compute_dtype)


# ------------------------- pure-JAX f32 reference ----------------------------

def encoder_layer_ref(x, p, heads_num):
    B, S, D = x.shape
    K = D // heads_num
    q = (x @ p['wq']).reshape(B, S, heads_num, K).transpose(0, 2, 1, 3)
    k = (x @ p['wk']).reshape(B, S, heads_num, K).transpose(0, 2, 1, 3)
    v = (x @ p['wv']).reshape(B, S, heads_num, K).transpose(0, 2, 1, 3)
    s = jnp.einsum('bhqk,bhtk->bhqt', q, k) / (K ** 0.5)
    a = jax.nn.softmax(s, axis=-1)
    o = jnp.einsum('bhqt,bhtk->bhqk', a, v).transpose(0, 2, 1, 3).reshape(B, S, D)
    o = o @ p['wo']

    def ln(h, g, b):
        mu = jnp.mean(h, -1, keepdims=True)
        var = jnp.mean((h - mu) ** 2, -1, keepdims=True)
        return (h - mu) * jax.lax.rsqrt(var + 1e-5) * g + b

    h1 = ln(x + o, p['ln1_g'], p['ln1_b'])
    ff = jnp.maximum(h1 @ p['w1'] + p['b1'], 0.0) @ p['w2'] + p['b2']
    return ln(h1 + ff, p['ln2_g'], p['ln2_b'])


def encoder_ref(tokens, embedding, pos_encoding, layer_params, heads_num):
    x = jnp.take(embedding, tokens, axis=0)
    x = x + pos_encoding[None, :tokens.shape[1], :]
    for p in layer_params:
        x = encoder_layer_ref(x, p, heads_num)
    return x


# --------------------------------- main --------------------------------------

if __name__ == "__main__":
    # small shapes: batch=2, seq=8, d_model=32, heads=4, d_ff=64, layers=2
    B, S, D, H, DFF, LAYERS = 2, 8, 32, 4, 64, 2
    VOCAB, PAD_IDX, MAX_SEQ = 50, 0, 64

    root = jax.random.PRNGKey(0)
    k_emb, k_tok, *k_layers = jax.random.split(root, 2 + LAYERS)

    embedding = 0.02 * jax.random.normal(k_emb, (VOCAB, D), jnp.float32)
    embedding = embedding.at[PAD_IDX].set(0.0)                 # padding_idx row = 0
    pos_encoding = make_position_encoding(D, MAX_SEQ)
    layer_params = [init_layer_params(k, D, DFF) for k in k_layers]

    tokens = jax.random.randint(k_tok, (B, S), 0, VOCAB, dtype=jnp.int32)

    out = encoder_forward(tokens, embedding, pos_encoding, layer_params, H,
                          compute_dtype=jnp.bfloat16)
    out = jax.block_until_ready(out)

    ref = encoder_ref(tokens, embedding, pos_encoding, layer_params, H)
    assert out.shape == (B, S, D)
    # bf16 MXU inputs + approx softmax reciprocal vs. full-f32 reference.
    assert jnp.allclose(out, ref, atol=3e-2, rtol=3e-2), "mismatch vs. JAX reference"

    print("KERNEL_OK")
</pallas_src>

<mosaic_0001>
module attributes {stable_mosaic.version = 11 : i64} {
  func.func @fused_encoder_kernel(%arg0: i32, %arg1: i32, %arg2: memref<16x32xf32, #tpu.memory_space<vmem>>, %arg3: memref<1x32x32xbf16, #tpu.memory_space<vmem>>, %arg4: memref<1x32x32xbf16, #tpu.memory_space<vmem>>, %arg5: memref<1x32x32xbf16, #tpu.memory_space<vmem>>, %arg6: memref<1x32x32xbf16, #tpu.memory_space<vmem>>, %arg7: memref<1x32x64xbf16, #tpu.memory_space<vmem>>, %arg8: memref<1x1x64xf32, #tpu.memory_space<vmem>>, %arg9: memref<1x64x32xbf16, #tpu.memory_space<vmem>>, %arg10: memref<1x1x32xf32, #tpu.memory_space<vmem>>, %arg11: memref<1x1x32xf32, #tpu.memory_space<vmem>>, %arg12: memref<1x1x32xf32, #tpu.memory_space<vmem>>, %arg13: memref<1x1x32xf32, #tpu.memory_space<vmem>>, %arg14: memref<1x1x32xf32, #tpu.memory_space<vmem>>, %arg15: memref<16x32xf32, #tpu.memory_space<vmem>>) attributes {dimension_semantics = [#tpu.dimension_semantics<parallel>, #tpu.dimension_semantics<arbitrary>], iteration_bounds = array<i64: 1, 2>, scalar_prefetch = 0 : i64, scratch_operands = 0 : i64, tpu.core_type = #tpu.core_type<tc>, window_params = [{transform_indices = @transform_0, window_bounds = array<i64: 16, 32>}, {transform_indices = @transform_1, window_bounds = array<i64: 1, 32, 32>}, {transform_indices = @transform_2, window_bounds = array<i64: 1, 32, 32>}, {transform_indices = @transform_3, window_bounds = array<i64: 1, 32, 32>}, {transform_indices = @transform_4, window_bounds = array<i64: 1, 32, 32>}, {transform_indices = @transform_5, window_bounds = array<i64: 1, 32, 64>}, {transform_indices = @transform_6, window_bounds = array<i64: 1, 1, 64>}, {transform_indices = @transform_7, window_bounds = array<i64: 1, 64, 32>}, {transform_indices = @transform_8, window_bounds = array<i64: 1, 1, 32>}, {transform_indices = @transform_9, window_bounds = array<i64: 1, 1, 32>}, {transform_indices = @transform_10, window_bounds = array<i64: 1, 1, 32>}, {transform_indices = @transform_11, window_bounds = array<i64: 1, 1, 32>}, {transform_indices = @transform_12, window_bounds = array<i64: 1, 1, 32>}, {transform_indices = @transform_13, window_bounds = array<i64: 16, 32>}]} {
    %c0_i32 = arith.constant 0 : i32
    %0 = arith.cmpi eq, %arg1, %c0_i32 : i32
    %1 = arith.extui %0 : i1 to i32
    %c0_i32_0 = arith.constant 0 : i32
    %2 = arith.cmpi ne, %1, %c0_i32_0 : i32
    scf.if %2 {
      %c0_61 = arith.constant 0 : index
      %c0_62 = arith.constant 0 : index
      %149 = vector.load %arg2[%c0_61, %c0_62] : memref<16x32xf32, #tpu.memory_space<vmem>>, vector<16x32xf32>
      %c0_63 = arith.constant 0 : index
      %c0_64 = arith.constant 0 : index
      %150 = vector.load %arg15[%c0_63, %c0_64] : memref<16x32xf32, #tpu.memory_space<vmem>>, vector<16x32xf32>
      tpu.vector_store %arg15[%c0_63, %c0_64], %149 {strides = array<i32>} : memref<16x32xf32, #tpu.memory_space<vmem>>, vector<16x32xf32>,
    } else {
    }
    %c0 = arith.constant 0 : index
    %c0_1 = arith.constant 0 : index
    %3 = vector.load %arg15[%c0, %c0_1] : memref<16x32xf32, #tpu.memory_space<vmem>>, vector<16x32xf32>
    %4 = arith.truncf %3 : vector<16x32xf32> to vector<16x32xbf16>
    %c0_2 = arith.constant 0 : index
    %c0_3 = arith.constant 0 : index
    %c0_4 = arith.constant 0 : index
    %5 = vector.load %arg3[%c0_2, %c0_3, %c0_4] : memref<1x32x32xbf16, #tpu.memory_space<vmem>>, vector<1x32x32xbf16>
    %6 = vector.shape_cast %5 : vector<1x32x32xbf16> to vector<32x32xbf16>
    %c0_5 = arith.constant 0 : index
    %c0_6 = arith.constant 0 : index
    %c0_7 = arith.constant 0 : index
    %7 = vector.load %arg4[%c0_5, %c0_6, %c0_7] : memref<1x32x32xbf16, #tpu.memory_space<vmem>>, vector<1x32x32xbf16>
    %8 = vector.shape_cast %7 : vector<1x32x32xbf16> to vector<32x32xbf16>
    %c0_8 = arith.constant 0 : index
    %c0_9 = arith.constant 0 : index
    %c0_10 = arith.constant 0 : index
    %9 = vector.load %arg5[%c0_8, %c0_9, %c0_10] : memref<1x32x32xbf16, #tpu.memory_space<vmem>>, vector<1x32x32xbf16>
    %10 = vector.shape_cast %9 : vector<1x32x32xbf16> to vector<32x32xbf16>
    %c0_11 = arith.constant 0 : index
    %c0_12 = arith.constant 0 : index
    %c0_13 = arith.constant 0 : index
    %11 = vector.load %arg6[%c0_11, %c0_12, %c0_13] : memref<1x32x32xbf16, #tpu.memory_space<vmem>>, vector<1x32x32xbf16>
    %12 = vector.shape_cast %11 : vector<1x32x32xbf16> to vector<32x32xbf16>
    %cst = arith.constant dense<0.000000e+00> : vector<16x32xf32>
    %13 = tpu.matmul %4, %6, %cst {dimension_numbers = #tpu.dot_dimension_numbers<[1], [0], [0], [1], [0, 0, 1, 1], [], []>} : vector<16x32xbf16>, vector<32x32xbf16>, vector<16x32xf32> -> vector<16x32xf32>
    %cst_14 = arith.constant 0.353553385 : f32
    %14 = vector.broadcast %cst_14 : f32 to vector<16x32xf32>
    %15 = arith.mulf %13, %14 : vector<16x32xf32>
    %cst_15 = arith.constant dense<0.000000e+00> : vector<16x32xf32>
    %16 = tpu.matmul %4, %8, %cst_15 {dimension_numbers = #tpu.dot_dimension_numbers<[1], [0], [0], [1], [0, 0, 1, 1], [], []>} : vector<16x32xbf16>, vector<32x32xbf16>, vector<16x32xf32> -> vector<16x32xf32>
    %cst_16 = arith.constant dense<0.000000e+00> : vector<16x32xf32>
    %17 = tpu.matmul %4, %10, %cst_16 {dimension_numbers = #tpu.dot_dimension_numbers<[1], [0], [0], [1], [0, 0, 1, 1], [], []>} : vector<16x32xbf16>, vector<32x32xbf16>, vector<16x32xf32> -> vector<16x32xf32>
    %18 = vector.extract_strided_slice %15 {offsets = [0, 0], sizes = [16, 8], strides = [1, 1]} : vector<16x32xf32> to vector<16x8xf32>
    %19 = vector.shape_cast %18 : vector<16x8xf32> to vector<1x2x8x8xf32>
    %20 = vector.extract_strided_slice %15 {offsets = [0, 8], sizes = [16, 8], strides = [1, 1]} : vector<16x32xf32> to vector<16x8xf32>
    %21 = vector.shape_cast %20 : vector<16x8xf32> to vector<1x2x8x8xf32>
    %22 = vector.extract_strided_slice %15 {offsets = [0, 16], sizes = [16, 8], strides = [1, 1]} : vector<16x32xf32> to vector<16x8xf32>
    %23 = vector.shape_cast %22 : vector<16x8xf32> to vector<1x2x8x8xf32>
    %24 = vector.extract_strided_slice %15 {offsets = [0, 24], sizes = [16, 8], strides = [1, 1]} : vector<16x32xf32> to vector<16x8xf32>
    %25 = vector.shape_cast %24 : vector<16x8xf32> to vector<1x2x8x8xf32>
    %26 = tpu.concatenate %19, %21, %23, %25 in 0 : vector<1x2x8x8xf32>, vector<1x2x8x8xf32>, vector<1x2x8x8xf32>, vector<1x2x8x8xf32> -> vector<4x2x8x8xf32>
    %27 = vector.shape_cast %26 : vector<4x2x8x8xf32> to vector<8x8x8xf32>
    %28 = arith.truncf %27 : vector<8x8x8xf32> to vector<8x8x8xbf16>
    %29 = vector.extract_strided_slice %16 {offsets = [0, 0], sizes = [16, 8], strides = [1, 1]} : vector<16x32xf32> to vector<16x8xf32>
    %30 = vector.shape_cast %29 : vector<16x8xf32> to vector<1x2x8x8xf32>
    %31 = vector.extract_strided_slice %16 {offsets = [0, 8], sizes = [16, 8], strides = [1, 1]} : vector<16x32xf32> to vector<16x8xf32>
    %32 = vector.shape_cast %31 : vector<16x8xf32> to vector<1x2x8x8xf32>
    %33 = vector.extract_strided_slice %16 {offsets = [0, 16], sizes = [16, 8], strides = [1, 1]} : vector<16x32xf32> to vector<16x8xf32>
    %34 = vector.shape_cast %33 : vector<16x8xf32> to vector<1x2x8x8xf32>
    %35 = vector.extract_strided_slice %16 {offsets = [0, 24], sizes = [16, 8], strides = [1, 1]} : vector<16x32xf32> to vector<16x8xf32>
    %36 = vector.shape_cast %35 : vector<16x8xf32> to vector<1x2x8x8xf32>
    %37 = tpu.concatenate %30, %32, %34, %36 in 0 : vector<1x2x8x8xf32>, vector<1x2x8x8xf32>, vector<1x2x8x8xf32>, vector<1x2x8x8xf32> -> vector<4x2x8x8xf32>
    %38 = vector.shape_cast %37 : vector<4x2x8x8xf32> to vector<8x8x8xf32>
    %39 = arith.truncf %38 : vector<8x8x8xf32> to vector<8x8x8xbf16>
    %40 = vector.extract_strided_slice %17 {offsets = [0, 0], sizes = [16, 8], strides = [1, 1]} : vector<16x32xf32> to vector<16x8xf32>
    %41 = vector.shape_cast %40 : vector<16x8xf32> to vector<1x2x8x8xf32>
    %42 = vector.extract_strided_slice %17 {offsets = [0, 8], sizes = [16, 8], strides = [1, 1]} : vector<16x32xf32> to vector<16x8xf32>
    %43 = vector.shape_cast %42 : vector<16x8xf32> to vector<1x2x8x8xf32>
    %44 = vector.extract_strided_slice %17 {offsets = [0, 16], sizes = [16, 8], strides = [1, 1]} : vector<16x32xf32> to vector<16x8xf32>
    %45 = vector.shape_cast %44 : vector<16x8xf32> to vector<1x2x8x8xf32>
    %46 = vector.extract_strided_slice %17 {offsets = [0, 24], sizes = [16, 8], strides = [1, 1]} : vector<16x32xf32> to vector<16x8xf32>
    %47 = vector.shape_cast %46 : vector<16x8xf32> to vector<1x2x8x8xf32>
    %48 = tpu.concatenate %41, %43, %45, %47 in 0 : vector<1x2x8x8xf32>, vector<1x2x8x8xf32>, vector<1x2x8x8xf32>, vector<1x2x8x8xf32> -> vector<4x2x8x8xf32>
    %49 = vector.shape_cast %48 : vector<4x2x8x8xf32> to vector<8x8x8xf32>
    %50 = arith.truncf %49 : vector<8x8x8xf32> to vector<8x8x8xbf16>
    "tpu.trace_start"() <{level = 10 : i32, message = "nqk,ntk->nqt"}> : () -> ()
    %cst_17 = arith.constant dense<0.000000e+00> : vector<8x8x8xf32>
    %51 = tpu.matmul %28, %39, %cst_17 {dimension_numbers = #tpu.dot_dimension_numbers<[2], [2], [1], [1], [0, 0, 0, 1, 1, 1], [0], [0]>} : vector<8x8x8xbf16>, vector<8x8x8xbf16>, vector<8x8x8xf32> -> vector<8x8x8xf32>
    "tpu.trace_stop"() : () -> ()
    %cst_18 = arith.constant dense<0xFF800000> : vector<8x8xf32>
    %52 = vector.multi_reduction <maximumf>, %51, %cst_18 [2] : vector<8x8x8xf32> to vector<8x8xf32>
    %53 = vector.shape_cast %52 : vector<8x8xf32> to vector<8x8x1xf32>
    %54 = vector.broadcast %53 : vector<8x8x1xf32> to vector<8x8x8xf32>
    %55 = arith.subf %51, %54 : vector<8x8x8xf32>
    %56 = math.exp %55 : vector<8x8x8xf32>
    %cst_19 = arith.constant dense<0.000000e+00> : vector<8x8xf32>
    %57 = vector.multi_reduction <add>, %56, %cst_19 [2] : vector<8x8x8xf32> to vector<8x8xf32>
    %58 = vector.shape_cast %57 : vector<8x8xf32> to vector<8x8x1xf32>
    %59 = tpu.reciprocal %58 {approx = true} : vector<8x8x1xf32> -> vector<8x8x1xf32>
    %60 = vector.broadcast %59 : vector<8x8x1xf32> to vector<8x8x8xf32>
    %61 = arith.mulf %56, %60 : vector<8x8x8xf32>
    %62 = arith.truncf %61 : vector<8x8x8xf32> to vector<8x8x8xbf16>
    "tpu.trace_start"() <{level = 10 : i32, message = "nqt,ntk->nqk"}> : () -> ()
    %cst_20 = arith.constant dense<0.000000e+00> : vector<8x8x8xf32>
    %63 = tpu.matmul %62, %50, %cst_20 {dimension_numbers = #tpu.dot_dimension_numbers<[2], [1], [1], [2], [0, 0, 0, 1, 1, 2], [0], [0]>} : vector<8x8x8xbf16>, vector<8x8x8xbf16>, vector<8x8x8xf32> -> vector<8x8x8xf32>
    "tpu.trace_stop"() : () -> ()
    %64 = vector.shape_cast %63 : vector<8x8x8xf32> to vector<4x16x8xf32>
    %65 = vector.extract_strided_slice %64 {offsets = [0, 0, 0], sizes = [1, 16, 8], strides = [1, 1, 1]} : vector<4x16x8xf32> to vector<1x16x8xf32>
    %66 = vector.shape_cast %65 : vector<1x16x8xf32> to vector<16x8xf32>
    %67 = vector.extract_strided_slice %64 {offsets = [1, 0, 0], sizes = [1, 16, 8], strides = [1, 1, 1]} : vector<4x16x8xf32> to vector<1x16x8xf32>
    %68 = vector.shape_cast %67 : vector<1x16x8xf32> to vector<16x8xf32>
    %69 = vector.extract_strided_slice %64 {offsets = [2, 0, 0], sizes = [1, 16, 8], strides = [1, 1, 1]} : vector<4x16x8xf32> to vector<1x16x8xf32>
    %70 = vector.shape_cast %69 : vector<1x16x8xf32> to vector<16x8xf32>
    %71 = vector.extract_strided_slice %64 {offsets = [3, 0, 0], sizes = [1, 16, 8], strides = [1, 1, 1]} : vector<4x16x8xf32> to vector<1x16x8xf32>
    %72 = vector.shape_cast %71 : vector<1x16x8xf32> to vector<16x8xf32>
    %73 = tpu.concatenate %66, %68, %70, %72 in 1 : vector<16x8xf32>, vector<16x8xf32>, vector<16x8xf32>, vector<16x8xf32> -> vector<16x32xf32>
    %74 = arith.truncf %73 : vector<16x32xf32> to vector<16x32xbf16>
    %cst_21 = arith.constant dense<0.000000e+00> : vector<16x32xf32>
    %75 = tpu.matmul %74, %12, %cst_21 {dimension_numbers = #tpu.dot_dimension_numbers<[1], [0], [0], [1], [0, 0, 1, 1], [], []>} : vector<16x32xbf16>, vector<32x32xbf16>, vector<16x32xf32> -> vector<16x32xf32>
    %76 = arith.addf %3, %75 : vector<16x32xf32>
    %cst_22 = arith.constant dense<0.000000e+00> : vector<16xf32>
    %77 = vector.multi_reduction <add>, %76, %cst_22 [1] : vector<16x32xf32> to vector<16xf32>
    %78 = vector.shape_cast %77 : vector<16xf32> to vector<16x1xf32>
    %cst_23 = arith.constant 3.200000e+01 : f32
    %79 = vector.broadcast %cst_23 : f32 to vector<16x1xf32>
    %80 = arith.divf %78, %79 : vector<16x1xf32>
    %81 = vector.broadcast %80 : vector<16x1xf32> to vector<16x32xf32>
    %82 = arith.subf %76, %81 : vector<16x32xf32>
    %83 = arith.mulf %82, %82 : vector<16x32xf32>
    %cst_24 = arith.constant dense<0.000000e+00> : vector<16xf32>
    %84 = vector.multi_reduction <add>, %83, %cst_24 [1] : vector<16x32xf32> to vector<16xf32>
    %85 = vector.shape_cast %84 : vector<16xf32> to vector<16x1xf32>
    %cst_25 = arith.constant 3.200000e+01 : f32
    %86 = vector.broadcast %cst_25 : f32 to vector<16x1xf32>
    %87 = arith.divf %85, %86 : vector<16x1xf32>
    %88 = vector.broadcast %80 : vector<16x1xf32> to vector<16x32xf32>
    %89 = arith.subf %76, %88 : vector<16x32xf32>
    %cst_26 = arith.constant 9.99999974E-6 : f32
    %90 = vector.broadcast %cst_26 : f32 to vector<16x1xf32>
    %91 = arith.addf %87, %90 : vector<16x1xf32>
    %92 = math.rsqrt %91 : vector<16x1xf32>
    %93 = vector.broadcast %92 : vector<16x1xf32> to vector<16x32xf32>
    %94 = arith.mulf %89, %93 : vector<16x32xf32>
    %c0_27 = arith.constant 0 : index
    %c0_28 = arith.constant 0 : index
    %c0_29 = arith.constant 0 : index
    %95 = vector.load %arg11[%c0_27, %c0_28, %c0_29] : memref<1x1x32xf32, #tpu.memory_space<vmem>>, vector<1x1x32xf32>
    %96 = vector.shape_cast %95 : vector<1x1x32xf32> to vector<1x32xf32>
    %97 = vector.broadcast %96 : vector<1x32xf32> to vector<16x32xf32>
    %98 = arith.mulf %94, %97 : vector<16x32xf32>
    %c0_30 = arith.constant 0 : index
    %c0_31 = arith.constant 0 : index
    %c0_32 = arith.constant 0 : index
    %99 = vector.load %arg12[%c0_30, %c0_31, %c0_32] : memref<1x1x32xf32, #tpu.memory_space<vmem>>, vector<1x1x32xf32>
    %100 = vector.shape_cast %99 : vector<1x1x32xf32> to vector<1x32xf32>
    %101 = vector.broadcast %100 : vector<1x32xf32> to vector<16x32xf32>
    %102 = arith.addf %98, %101 : vector<16x32xf32>
    %103 = arith.truncf %102 : vector<16x32xf32> to vector<16x32xbf16>
    %c0_33 = arith.constant 0 : index
    %c0_34 = arith.constant 0 : index
    %c0_35 = arith.constant 0 : index
    %104 = vector.load %arg7[%c0_33, %c0_34, %c0_35] : memref<1x32x64xbf16, #tpu.memory_space<vmem>>, vector<1x32x64xbf16>
    %105 = vector.shape_cast %104 : vector<1x32x64xbf16> to vector<32x64xbf16>
    %cst_36 = arith.constant dense<0.000000e+00> : vector<16x64xf32>
    %106 = tpu.matmul %103, %105, %cst_36 {dimension_numbers = #tpu.dot_dimension_numbers<[1], [0], [0], [1], [0, 0, 1, 1], [], []>} : vector<16x32xbf16>, vector<32x64xbf16>, vector<16x64xf32> -> vector<16x64xf32>
    %c0_37 = arith.constant 0 : index
    %c0_38 = arith.constant 0 : index
    %c0_39 = arith.constant 0 : index
    %107 = vector.load %arg8[%c0_37, %c0_38, %c0_39] : memref<1x1x64xf32, #tpu.memory_space<vmem>>, vector<1x1x64xf32>
    %108 = vector.shape_cast %107 : vector<1x1x64xf32> to vector<1x64xf32>
    %109 = vector.broadcast %108 : vector<1x64xf32> to vector<16x64xf32>
    %110 = arith.addf %106, %109 : vector<16x64xf32>
    %cst_40 = arith.constant 0.000000e+00 : f32
    %111 = vector.broadcast %cst_40 : f32 to vector<16x64xf32>
    %112 = arith.maximumf %110, %111 : vector<16x64xf32>
    %113 = arith.truncf %112 : vector<16x64xf32> to vector<16x64xbf16>
    %c0_41 = arith.constant 0 : index
    %c0_42 = arith.constant 0 : index
    %c0_43 = arith.constant 0 : index
    %114 = vector.load %arg9[%c0_41, %c0_42, %c0_43] : memref<1x64x32xbf16, #tpu.memory_space<vmem>>, vector<1x64x32xbf16>
    %115 = vector.shape_cast %114 : vector<1x64x32xbf16> to vector<64x32xbf16>
    %cst_44 = arith.constant dense<0.000000e+00> : vector<16x32xf32>
    %116 = tpu.matmul %113, %115, %cst_44 {dimension_numbers = #tpu.dot_dimension_numbers<[1], [0], [0], [1], [0, 0, 1, 1], [], []>} : vector<16x64xbf16>, vector<64x32xbf16>, vector<16x32xf32> -> vector<16x32xf32>
    %c0_45 = arith.constant 0 : index
    %c0_46 = arith.constant 0 : index
    %c0_47 = arith.constant 0 : index
    %117 = vector.load %arg10[%c0_45, %c0_46, %c0_47] : memref<1x1x32xf32, #tpu.memory_space<vmem>>, vector<1x1x32xf32>
    %118 = vector.shape_cast %117 : vector<1x1x32xf32> to vector<1x32xf32>
    %119 = vector.broadcast %118 : vector<1x32xf32> to vector<16x32xf32>
    %120 = arith.addf %116, %119 : vector<16x32xf32>
    %121 = arith.addf %102, %120 : vector<16x32xf32>
    %cst_48 = arith.constant dense<0.000000e+00> : vector<16xf32>
    %122 = vector.multi_reduction <add>, %121, %cst_48 [1] : vector<16x32xf32> to vector<16xf32>
    %123 = vector.shape_cast %122 : vector<16xf32> to vector<16x1xf32>
    %cst_49 = arith.constant 3.200000e+01 : f32
    %124 = vector.broadcast %cst_49 : f32 to vector<16x1xf32>
    %125 = arith.divf %123, %124 : vector<16x1xf32>
    %126 = vector.broadcast %125 : vector<16x1xf32> to vector<16x32xf32>
    %127 = arith.subf %121, %126 : vector<16x32xf32>
    %128 = arith.mulf %127, %127 : vector<16x32xf32>
    %cst_50 = arith.constant dense<0.000000e+00> : vector<16xf32>
    %129 = vector.multi_reduction <add>, %128, %cst_50 [1] : vector<16x32xf32> to vector<16xf32>
    %130 = vector.shape_cast %129 : vector<16xf32> to vector<16x1xf32>
    %cst_51 = arith.constant 3.200000e+01 : f32
    %131 = vector.broadcast %cst_51 : f32 to vector<16x1xf32>
    %132 = arith.divf %130, %131 : vector<16x1xf32>
    %133 = vector.broadcast %125 : vector<16x1xf32> to vector<16x32xf32>
    %134 = arith.subf %121, %133 : vector<16x32xf32>
    %cst_52 = arith.constant 9.99999974E-6 : f32
    %135 = vector.broadcast %cst_52 : f32 to vector<16x1xf32>
    %136 = arith.addf %132, %135 : vector<16x1xf32>
    %137 = math.rsqrt %136 : vector<16x1xf32>
    %138 = vector.broadcast %137 : vector<16x1xf32> to vector<16x32xf32>
    %139 = arith.mulf %134, %138 : vector<16x32xf32>
    %c0_53 = arith.constant 0 : index
    %c0_54 = arith.constant 0 : index
    %c0_55 = arith.constant 0 : index
    %140 = vector.load %arg13[%c0_53, %c0_54, %c0_55] : memref<1x1x32xf32, #tpu.memory_space<vmem>>, vector<1x1x32xf32>
    %141 = vector.shape_cast %140 : vector<1x1x32xf32> to vector<1x32xf32>
    %142 = vector.broadcast %141 : vector<1x32xf32> to vector<16x32xf32>
    %143 = arith.mulf %139, %142 : vector<16x32xf32>
    %c0_56 = arith.constant 0 : index
    %c0_57 = arith.constant 0 : index
    %c0_58 = arith.constant 0 : index
    %144 = vector.load %arg14[%c0_56, %c0_57, %c0_58] : memref<1x1x32xf32, #tpu.memory_space<vmem>>, vector<1x1x32xf32>
    %145 = vector.shape_cast %144 : vector<1x1x32xf32> to vector<1x32xf32>
    %146 = vector.broadcast %145 : vector<1x32xf32> to vector<16x32xf32>
    %147 = arith.addf %143, %146 : vector<16x32xf32>
    %c0_59 = arith.constant 0 : index
    %c0_60 = arith.constant 0 : index
    %148 = vector.load %arg15[%c0_59, %c0_60] : memref<16x32xf32, #tpu.memory_space<vmem>>, vector<16x32xf32>
    tpu.vector_store %arg15[%c0_59, %c0_60], %147 {strides = array<i32>} : memref<16x32xf32, #tpu.memory_space<vmem>>, vector<16x32xf32>,
    return
  }
  func.func @transform_0(%arg0: i32, %arg1: i32) -> (i32, i32) {
    %c0_i32 = arith.constant 0 : i32
    %c0_i32_0 = arith.constant 0 : i32
    return %arg0, %c0_i32 : i32, i32
  }
  func.func @transform_1(%arg0: i32, %arg1: i32) -> (i32, i32, i32) {
    %c0_i32 = arith.constant 0 : i32
    %c0_i32_0 = arith.constant 0 : i32
    %c0_i32_1 = arith.constant 0 : i32
    return %arg1, %c0_i32, %c0_i32_0 : i32, i32, i32
  }
  func.func @transform_2(%arg0: i32, %arg1: i32) -> (i32, i32, i32) {
    %c0_i32 = arith.constant 0 : i32
    %c0_i32_0 = arith.constant 0 : i32
    %c0_i32_1 = arith.constant 0 : i32
    return %arg1, %c0_i32, %c0_i32_0 : i32, i32, i32
  }
  func.func @transform_3(%arg0: i32, %arg1: i32) -> (i32, i32, i32) {
    %c0_i32 = arith.constant 0 : i32
    %c0_i32_0 = arith.constant 0 : i32
    %c0_i32_1 = arith.constant 0 : i32
    return %arg1, %c0_i32, %c0_i32_0 : i32, i32, i32
  }
  func.func @transform_4(%arg0: i32, %arg1: i32) -> (i32, i32, i32) {
    %c0_i32 = arith.constant 0 : i32
    %c0_i32_0 = arith.constant 0 : i32
    %c0_i32_1 = arith.constant 0 : i32
    return %arg1, %c0_i32, %c0_i32_0 : i32, i32, i32
  }
  func.func @transform_5(%arg0: i32, %arg1: i32) -> (i32, i32, i32) {
    %c0_i32 = arith.constant 0 : i32
    %c0_i32_0 = arith.constant 0 : i32
    %c0_i32_1 = arith.constant 0 : i32
    return %arg1, %c0_i32, %c0_i32_0 : i32, i32, i32
  }
  func.func @transform_6(%arg0: i32, %arg1: i32) -> (i32, i32, i32) {
    %c0_i32 = arith.constant 0 : i32
    %c0_i32_0 = arith.constant 0 : i32
    %c0_i32_1 = arith.constant 0 : i32
    return %arg1, %c0_i32, %c0_i32_0 : i32, i32, i32
  }
  func.func @transform_7(%arg0: i32, %arg1: i32) -> (i32, i32, i32) {
    %c0_i32 = arith.constant 0 : i32
    %c0_i32_0 = arith.constant 0 : i32
    %c0_i32_1 = arith.constant 0 : i32
    return %arg1, %c0_i32, %c0_i32_0 : i32, i32, i32
  }
  func.func @transform_8(%arg0: i32, %arg1: i32) -> (i32, i32, i32) {
    %c0_i32 = arith.constant 0 : i32
    %c0_i32_0 = arith.constant 0 : i32
    %c0_i32_1 = arith.constant 0 : i32
    return %arg1, %c0_i32, %c0_i32_0 : i32, i32, i32
  }
  func.func @transform_9(%arg0: i32, %arg1: i32) -> (i32, i32, i32) {
    %c0_i32 = arith.constant 0 : i32
    %c0_i32_0 = arith.constant 0 : i32
    %c0_i32_1 = arith.constant 0 : i32
    return %arg1, %c0_i32, %c0_i32_0 : i32, i32, i32
  }
  func.func @transform_10(%arg0: i32, %arg1: i32) -> (i32, i32, i32) {
    %c0_i32 = arith.constant 0 : i32
    %c0_i32_0 = arith.constant 0 : i32
    %c0_i32_1 = arith.constant 0 : i32
    return %arg1, %c0_i32, %c0_i32_0 : i32, i32, i32
  }
  func.func @transform_11(%arg0: i32, %arg1: i32) -> (i32, i32, i32) {
    %c0_i32 = arith.constant 0 : i32
    %c0_i32_0 = arith.constant 0 : i32
    %c0_i32_1 = arith.constant 0 : i32
    return %arg1, %c0_i32, %c0_i32_0 : i32, i32, i32
  }
  func.func @transform_12(%arg0: i32, %arg1: i32) -> (i32, i32, i32) {
    %c0_i32 = arith.constant 0 : i32
    %c0_i32_0 = arith.constant 0 : i32
    %c0_i32_1 = arith.constant 0 : i32
    return %arg1, %c0_i32, %c0_i32_0 : i32, i32, i32
  }
  func.func @transform_13(%arg0: i32, %arg1: i32) -> (i32, i32) {
    %c0_i32 = arith.constant 0 : i32
    %c0_i32_0 = arith.constant 0 : i32
    return %arg0, %c0_i32 : i32, i32
  }
}

</mosaic_0001>

<llo_original>
// kernel: tpu_custom_call.1
$region0: #{tpu_custom_call.1}
  #allocation0 [shape = 'u32[]', space=smem, size = 0x4, offset = 0x4, fixed_abs, tag = 'smem constant byte address 0x4 - core index']
  #allocation1 [shape = 'u32[144,128]{1,0:T(1,128)}', space=vmem, size = 0x12000, scoped, tag = 'internal scratch']
  %s0 = inlined_call_operand.hbm [shape: f32[16,32], index: 0, kind: input, shape index: {}]
  %s1 = inlined_call_operand.hbm [shape: bf16[2,32,32], index: 1, kind: input, shape index: {}]
  %s2 = inlined_call_operand.hbm [shape: bf16[2,32,32], index: 2, kind: input, shape index: {}]
  %s3 = inlined_call_operand.hbm [shape: bf16[2,32,32], index: 3, kind: input, shape index: {}]
  %s4 = inlined_call_operand.hbm [shape: bf16[2,32,32], index: 4, kind: input, shape index: {}]
  %s5 = inlined_call_operand.hbm [shape: bf16[2,32,64], index: 5, kind: input, shape index: {}]
  %s6 = inlined_call_operand.hbm [shape: f32[2,1,64], index: 6, kind: input, shape index: {}]
  %s7 = inlined_call_operand.hbm [shape: bf16[2,64,32], index: 7, kind: input, shape index: {}]
  %s8 = inlined_call_operand.hbm [shape: f32[2,1,32], index: 8, kind: input, shape index: {}]
  %s9 = inlined_call_operand.hbm [shape: f32[2,1,32], index: 9, kind: input, shape index: {}]
  %s10 = inlined_call_operand.hbm [shape: f32[2,1,32], index: 10, kind: input, shape index: {}]
  %s11 = inlined_call_operand.hbm [shape: f32[2,1,32], index: 11, kind: input, shape index: {}]
  %s12 = inlined_call_operand.hbm [shape: f32[2,1,32], index: 12, kind: input, shape index: {}]
  %s13 = inlined_call_operand.hbm [shape: f32[16,32], index: 13, kind: output, shape index: {}]
  %s14 = sld [smem:[#allocation0]]
  $region141: #{tpu_custom_call.1} parent=0
    _
  %s16 = ssub.s32 1, %s14
  %s17 = scalar_select 0, %s16, %s14
  $region1: #{tpu_custom_call.1} parent=0
    #allocation2 [shape = 'u8[8192]{0}', space=vmem, size = 0x2000, scoped, tag = 'input window, operand 0, single buffered']
    #allocation3 [shape = 's32[2]{0}', space=sflag, size = 0x8, scoped, tag = 'scoped memory for tpu_custom_call.1']
    #allocation4 [shape = 's32[2]{0}', space=sflag, size = 0x8, scoped, tag = 'scoped memory for tpu_custom_call.1']
    #allocation5 [shape = 'u8[16384]{0}', space=vmem, size = 0x4000, scoped, tag = 'input window, operand 1']
    #allocation6 [shape = 's32[2]{0}', space=sflag, size = 0x8, scoped, tag = 'scoped memory for tpu_custom_call.1']
    #allocation7 [shape = 'u8[16384]{0}', space=vmem, size = 0x4000, scoped, tag = 'input window, operand 2']
    #allocation8 [shape = 'u8[16384]{0}', space=vmem, size = 0x4000, scoped, tag = 'input window, operand 3']
    #allocation9 [shape = 's32[2]{0}', space=sflag, size = 0x8, scoped, tag = 'scoped memory for tpu_custom_call.1']
    #allocation10 [shape = 'u8[16384]{0}', space=vmem, size = 0x4000, scoped, tag = 'input window, operand 4']
    #allocation11 [shape = 'u8[16384]{0}', space=vmem, size = 0x4000, scoped, tag = 'input window, operand 5']
    #allocation12 [shape = 's32[2]{0}', space=sflag, size = 0x8, scoped, tag = 'scoped memory for tpu_custom_call.1']
    #allocation13 [shape = 'u8[1024]{0}', space=vmem, size = 0x400, scoped, tag = 'input window, operand 6']
    #allocation14 [shape = 'u8[32768]{0}', space=vmem, size = 0x8000, scoped, tag = 'input window, operand 7']
    #allocation15 [shape = 's32[2]{0}', space=sflag, size = 0x8, scoped, tag = 'scoped memory for tpu_custom_call.1']
    #allocation16 [shape = 'u8[1024]{0}', space=vmem, size = 0x400, scoped, tag = 'input window, operand 8']
    #allocation17 [shape = 'u8[1024]{0}', space=vmem, size = 0x400, scoped, tag = 'input window, operand 9']
    #allocation18 [shape = 's32[2]{0}', space=sflag, size = 0x8, scoped, tag = 'scoped memory for tpu_custom_call.1']
    #allocation19 [shape = 'u8[1024]{0}', space=vmem, size = 0x400, scoped, tag = 'input window, operand 10']
    #allocation20 [shape = 'u8[1024]{0}', space=vmem, size = 0x400, scoped, tag = 'input window, operand 11']
    #allocation21 [shape = 's32[2]{0}', space=sflag, size = 0x8, scoped, tag = 'scoped memory for tpu_custom_call.1']
    #allocation22 [shape = 'u8[1024]{0}', space=vmem, size = 0x400, scoped, tag = 'input window, operand 12']
    #allocation23 [shape = 'u8[8192]{0}', space=vmem, size = 0x2000, scoped, tag = 'output window, operand 0, single buffered']
    %18 = vsyncpa [#allocation3], 0
    %19 = vsyncpa [#allocation6], 0
    %s20 = scalar_lea.sflag [#allocation6], 1
    %21 = vsyncpa %s20, 0
    %22 = vsyncpa [#allocation9], 0
    %s23 = scalar_lea.sflag [#allocation9], 1
    %24 = vsyncpa %s23, 0
    %25 = vsyncpa [#allocation12], 0
    %s26 = scalar_lea.sflag [#allocation12], 1
    %27 = vsyncpa %s26, 0
    %28 = vsyncpa [#allocation15], 0
    %s29 = scalar_lea.sflag [#allocation15], 1
    %30 = vsyncpa %s29, 0
    %31 = vsyncpa [#allocation18], 0
    %s32 = scalar_lea.sflag [#allocation18], 1
    %33 = vsyncpa %s32, 0
    %34 = vsyncpa [#allocation21], 0
    %s35 = scalar_lea.sflag [#allocation21], 1
    %36 = vsyncpa %s35, 0
    %37 = vsyncpa [#allocation4], 0
    loop: start=0, step=1, limit=4
    $region2: #{tpu_custom_call.1} parent=1 // loop_pre_header
      _
    $region3: #{tpu_custom_call.1} parent=1 // loop_header
      %s39 = sphi 0, %s43
      %p40 = scmp.ge.s32.totalorder %s39, 4
      %s46 = sphi 0, %s58
      %s47 = sphi 0, %s54
      %s48 = sphi 0, %s46
      %s49 = sphi 0, %s47
      %s50 = sphi 0, %s48
      %s51 = sphi 0, %s49
      %s61 = sphi 0, %s63
      %s64 = sphi 0, %s61
      %s65 = sphi 0, %s64
      %s81 = sphi 0, %s65
      %s87 = sphi 0, %s89
      %s90 = sphi 0, %s87
      %s91 = sphi 0, %s90
      %s107 = sphi 0, %s91
      %s113 = sphi 0, %s115
      %s116 = sphi 0, %s113
      %s117 = sphi 0, %s116
      %s133 = sphi 0, %s117
      %s139 = sphi 0, %s141
      %s142 = sphi 0, %s139
      %s143 = sphi 0, %s142
      %s159 = sphi 0, %s143
      %s165 = sphi 0, %s167
      %s168 = sphi 0, %s165
      %s169 = sphi 0, %s168
      %s185 = sphi 0, %s169
      %s191 = sphi 0, %s193
      %s194 = sphi 0, %s191
      %s195 = sphi 0, %s194
      %s211 = sphi 0, %s195
      %s217 = sphi 0, %s219
      %s220 = sphi 0, %s217
      %s221 = sphi 0, %s220
      %s237 = sphi 0, %s221
      %s243 = sphi 0, %s245
      %s246 = sphi 0, %s243
      %s247 = sphi 0, %s246
      %s263 = sphi 0, %s247
      %s269 = sphi 0, %s271
      %s272 = sphi 0, %s269
      %s273 = sphi 0, %s272
      %s289 = sphi 0, %s273
      %s295 = sphi 0, %s297
      %s298 = sphi 0, %s295
      %s299 = sphi 0, %s298
      %s315 = sphi 0, %s299
      %s321 = sphi 0, %s323
      %s324 = sphi 0, %s321
      %s325 = sphi 0, %s324
      %s341 = sphi 0, %s325
      %s347 = sphi 0, %s349
      %s350 = sphi 0, %s347
      %s351 = sphi 0, %s350
      %s367 = sphi 0, %s351
      %s373 = sphi 0, %s375
      %s376 = sphi 0, %s373
      %s377 = sphi 0, %s376
      %s393 = sphi 0, %s377
      %s399 = sphi 0, %s401
      %s402 = sphi 0, %s399
      %s403 = sphi 0, %s402
      %s419 = sphi 0, %s403
    $region4: #{tpu_custom_call.1} parent=1 // loop_header_branch
      %42 = sbr.rel (%p40) target = $region8
    $region5: #{tpu_custom_call.1} parent=1 // loop_body
      %s44 = ssub.s32 %s39, 1
      %s45 = ssub.s32 %s39, 2
      %s52 = sadd.s32 1, %s47
      %p53 = scmp.ge.s32.totalorder %s52, 2
      %s54 = scalar_select %p53, 0, %s52
      %s55 = sadd.s32 1, %s46
      %s56 = scalar_select %p53, %s55, %s46
      %p57 = scmp.ge.s32.totalorder %s56, 1
      %s58 = scalar_select %p57, 0, %s56
      %s59 = ssub.s32 %s46, %s58
      %p60 = scmp.eq.s32.totalorder %s59, 0
      %s62 = sadd.s32 %s61, 1
      %s63 = scalar_select %p60, %s61, %s62
      %p66 = pneg %p60
      %p67 = scmp.eq.s32.totalorder %s39, 1
      %p68 = por %p66, %p67
      %p69 = scmp.ne.s32.totalorder %s61, %s64
      %p70 = scmp.eq.s32.totalorder %s39, 0
      %p71 = por %p69, %p70
      %p72 = scmp.ne.s32.totalorder %s61, %s64
      %p73 = scmp.eq.s32.totalorder %s44, 1
      %p74 = por %p72, %p73
      %p75 = scmp.ne.s32.totalorder %s64, %s65
      %p76 = scmp.eq.s32.totalorder %s44, 0
      %p77 = por %p75, %p76
      %p78 = scmp.ne.s32.totalorder %s64, %s65
      %p79 = scmp.eq.s32.totalorder %s45, 1
      %p80 = por %p78, %p79
      %p82 = scmp.ne.s32.totalorder %s65, %s81
      %p83 = scmp.eq.s32.totalorder %s45, 0
      %p84 = por %p82, %p83
      %s85 = ssub.s32 %s47, %s54
      %p86 = scmp.eq.s32.totalorder %s85, 0
      %s88 = sadd.s32 %s87, 1
      %s89 = scalar_select %p86, %s87, %s88
      %p92 = pneg %p86
      %p93 = scmp.eq.s32.totalorder %s39, 1
      %p94 = por %p92, %p93
      %p95 = scmp.ne.s32.totalorder %s87, %s90
      %p96 = scmp.eq.s32.totalorder %s39, 0
      %p97 = por %p95, %p96
      %p98 = scmp.ne.s32.totalorder %s87, %s90
      %p99 = scmp.eq.s32.totalorder %s44, 1
      %p100 = por %p98, %p99
      %p101 = scmp.ne.s32.totalorder %s90, %s91
      %p102 = scmp.eq.s32.totalorder %s44, 0
      %p103 = por %p101, %p102
      %p104 = scmp.ne.s32.totalorder %s90, %s91
      %p105 = scmp.eq.s32.totalorder %s45, 1
      %p106 = por %p104, %p105
      %p108 = scmp.ne.s32.totalorder %s91, %s107
      %p109 = scmp.eq.s32.totalorder %s45, 0
      %p110 = por %p108, %p109
      %s111 = ssub.s32 %s47, %s54
      %p112 = scmp.eq.s32.totalorder %s111, 0
      %s114 = sadd.s32 %s113, 1
      %s115 = scalar_select %p112, %s113, %s114
      %p118 = pneg %p112
      %p119 = scmp.eq.s32.totalorder %s39, 1
      %p120 = por %p118, %p119
      %p121 = scmp.ne.s32.totalorder %s113, %s116
      %p122 = scmp.eq.s32.totalorder %s39, 0
      %p123 = por %p121, %p122
      %p124 = scmp.ne.s32.totalorder %s113, %s116
      %p125 = scmp.eq.s32.totalorder %s44, 1
      %p126 = por %p124, %p125
      %p127 = scmp.ne.s32.totalorder %s116, %s117
      %p128 = scmp.eq.s32.totalorder %s44, 0
      %p129 = por %p127, %p128
      %p130 = scmp.ne.s32.totalorder %s116, %s117
      %p131 = scmp.eq.s32.totalorder %s45, 1
      %p132 = por %p130, %p131
      %p134 = scmp.ne.s32.totalorder %s117, %s133
      %p135 = scmp.eq.s32.totalorder %s45, 0
      %p136 = por %p134, %p135
      %s137 = ssub.s32 %s47, %s54
      %p138 = scmp.eq.s32.totalorder %s137, 0
      %s140 = sadd.s32 %s139, 1
      %s141 = scalar_select %p138, %s139, %s140
      %p144 = pneg %p138
      %p145 = scmp.eq.s32.totalorder %s39, 1
      %p146 = por %p144, %p145
      %p147 = scmp.ne.s32.totalorder %s139, %s142
      %p148 = scmp.eq.s32.totalorder %s39, 0
      %p149 = por %p147, %p148
      %p150 = scmp.ne.s32.totalorder %s139, %s142
      %p151 = scmp.eq.s32.totalorder %s44, 1
      %p152 = por %p150, %p151
      %p153 = scmp.ne.s32.totalorder %s142, %s143
      %p154 = scmp.eq.s32.totalorder %s44, 0
      %p155 = por %p153, %p154
      %p156 = scmp.ne.s32.totalorder %s142, %s143
      %p157 = scmp.eq.s32.totalorder %s45, 1
      %p158 = por %p156, %p157
      %p160 = scmp.ne.s32.totalorder %s143, %s159
      %p161 = scmp.eq.s32.totalorder %s45, 0
      %p162 = por %p160, %p161
      %s163 = ssub.s32 %s47, %s54
      %p164 = scmp.eq.s32.totalorder %s163, 0
      %s166 = sadd.s32 %s165, 1
      %s167 = scalar_select %p164, %s165, %s166
      %p170 = pneg %p164
      %p171 = scmp.eq.s32.totalorder %s39, 1
      %p172 = por %p170, %p171
      %p173 = scmp.ne.s32.totalorder %s165, %s168
      %p174 = scmp.eq.s32.totalorder %s39, 0
      %p175 = por %p173, %p174
      %p176 = scmp.ne.s32.totalorder %s165, %s168
      %p177 = scmp.eq.s32.totalorder %s44, 1
      %p178 = por %p176, %p177
      %p179 = scmp.ne.s32.totalorder %s168, %s169
      %p180 = scmp.eq.s32.totalorder %s44, 0
      %p181 = por %p179, %p180
      %p182 = scmp.ne.s32.totalorder %s168, %s169
      %p183 = scmp.eq.s32.totalorder %s45, 1
      %p184 = por %p182, %p183
      %p186 = scmp.ne.s32.totalorder %s169, %s185
      %p187 = scmp.eq.s32.totalorder %s45, 0
      %p188 = por %p186, %p187
      %s189 = ssub.s32 %s47, %s54
      %p190 = scmp.eq.s32.totalorder %s189, 0
      %s192 = sadd.s32 %s191, 1
      %s193 = scalar_select %p190, %s191, %s192
      %p196 = pneg %p190
      %p197 = scmp.eq.s32.totalorder %s39, 1
      %p198 = por %p196, %p197
      %p199 = scmp.ne.s32.totalorder %s191, %s194
      %p200 = scmp.eq.s32.totalorder %s39, 0
      %p201 = por %p199, %p200
      %p202 = scmp.ne.s32.totalorder %s191, %s194
      %p203 = scmp.eq.s32.totalorder %s44, 1
      %p204 = por %p202, %p203
      %p205 = scmp.ne.s32.totalorder %s194, %s195
      %p206 = scmp.eq.s32.totalorder %s44, 0
      %p207 = por %p205, %p206
      %p208 = scmp.ne.s32.totalorder %s194, %s195
      %p209 = scmp.eq.s32.totalorder %s45, 1
      %p210 = por %p208, %p209
      %p212 = scmp.ne.s32.totalorder %s195, %s211
      %p213 = scmp.eq.s32.totalorder %s45, 0
      %p214 = por %p212, %p213
      %s215 = ssub.s32 %s47, %s54
      %p216 = scmp.eq.s32.totalorder %s215, 0
      %s218 = sadd.s32 %s217, 1
      %s219 = scalar_select %p216, %s217, %s218
      %p222 = pneg %p216
      %p223 = scmp.eq.s32.totalorder %s39, 1
      %p224 = por %p222, %p223
      %p225 = scmp.ne.s32.totalorder %s217, %s220
      %p226 = scmp.eq.s32.totalorder %s39, 0
      %p227 = por %p225, %p226
      %p228 = scmp.ne.s32.totalorder %s217, %s220
      %p229 = scmp.eq.s32.totalorder %s44, 1
      %p230 = por %p228, %p229
      %p231 = scmp.ne.s32.totalorder %s220, %s221
      %p232 = scmp.eq.s32.totalorder %s44, 0
      %p233 = por %p231, %p232
      %p234 = scmp.ne.s32.totalorder %s220, %s221
      %p235 = scmp.eq.s32.totalorder %s45, 1
      %p236 = por %p234, %p235
      %p238 = scmp.ne.s32.totalorder %s221, %s237
      %p239 = scmp.eq.s32.totalorder %s45, 0
      %p240 = por %p238, %p239
      %s241 = ssub.s32 %s47, %s54
      %p242 = scmp.eq.s32.totalorder %s241, 0
      %s244 = sadd.s32 %s243, 1
      %s245 = scalar_select %p242, %s243, %s244
      %p248 = pneg %p242
      %p249 = scmp.eq.s32.totalorder %s39, 1
      %p250 = por %p248, %p249
      %p251 = scmp.ne.s32.totalorder %s243, %s246
      %p252 = scmp.eq.s32.totalorder %s39, 0
      %p253 = por %p251, %p252
      %p254 = scmp.ne.s32.totalorder %s243, %s246
      %p255 = scmp.eq.s32.totalorder %s44, 1
      %p256 = por %p254, %p255
      %p257 = scmp.ne.s32.totalorder %s246, %s247
      %p258 = scmp.eq.s32.totalorder %s44, 0
      %p259 = por %p257, %p258
      %p260 = scmp.ne.s32.totalorder %s246, %s247
      %p261 = scmp.eq.s32.totalorder %s45, 1
      %p262 = por %p260, %p261
      %p264 = scmp.ne.s32.totalorder %s247, %s263
      %p265 = scmp.eq.s32.totalorder %s45, 0
      %p266 = por %p264, %p265
      %s267 = ssub.s32 %s47, %s54
      %p268 = scmp.eq.s32.totalorder %s267, 0
      %s270 = sadd.s32 %s269, 1
      %s271 = scalar_select %p268, %s269, %s270
      %p274 = pneg %p268
      %p275 = scmp.eq.s32.totalorder %s39, 1
      %p276 = por %p274, %p275
      %p277 = scmp.ne.s32.totalorder %s269, %s272
      %p278 = scmp.eq.s32.totalorder %s39, 0
      %p279 = por %p277, %p278
      %p280 = scmp.ne.s32.totalorder %s269, %s272
      %p281 = scmp.eq.s32.totalorder %s44, 1
      %p282 = por %p280, %p281
      %p283 = scmp.ne.s32.totalorder %s272, %s273
      %p284 = scmp.eq.s32.totalorder %s44, 0
      %p285 = por %p283, %p284
      %p286 = scmp.ne.s32.totalorder %s272, %s273
      %p287 = scmp.eq.s32.totalorder %s45, 1
      %p288 = por %p286, %p287
      %p290 = scmp.ne.s32.totalorder %s273, %s289
      %p291 = scmp.eq.s32.totalorder %s45, 0
      %p292 = por %p290, %p291
      %s293 = ssub.s32 %s47, %s54
      %p294 = scmp.eq.s32.totalorder %s293, 0
      %s296 = sadd.s32 %s295, 1
      %s297 = scalar_select %p294, %s295, %s296
      %p300 = pneg %p294
      %p301 = scmp.eq.s32.totalorder %s39, 1
      %p302 = por %p300, %p301
      %p303 = scmp.ne.s32.totalorder %s295, %s298
      %p304 = scmp.eq.s32.totalorder %s39, 0
      %p305 = por %p303, %p304
      %p306 = scmp.ne.s32.totalorder %s295, %s298
      %p307 = scmp.eq.s32.totalorder %s44, 1
      %p308 = por %p306, %p307
      %p309 = scmp.ne.s32.totalorder %s298, %s299
      %p310 = scmp.eq.s32.totalorder %s44, 0
      %p311 = por %p309, %p310
      %p312 = scmp.ne.s32.totalorder %s298, %s299
      %p313 = scmp.eq.s32.totalorder %s45, 1
      %p314 = por %p312, %p313
      %p316 = scmp.ne.s32.totalorder %s299, %s315
      %p317 = scmp.eq.s32.totalorder %s45, 0
      %p318 = por %p316, %p317
      %s319 = ssub.s32 %s47, %s54
      %p320 = scmp.eq.s32.totalorder %s319, 0
      %s322 = sadd.s32 %s321, 1
      %s323 = scalar_select %p320, %s321, %s322
      %p326 = pneg %p320
      %p327 = scmp.eq.s32.totalorder %s39, 1
      %p328 = por %p326, %p327
      %p329 = scmp.ne.s32.totalorder %s321, %s324
      %p330 = scmp.eq.s32.totalorder %s39, 0
      %p331 = por %p329, %p330
      %p332 = scmp.ne.s32.totalorder %s321, %s324
      %p333 = scmp.eq.s32.totalorder %s44, 1
      %p334 = por %p332, %p333
      %p335 = scmp.ne.s32.totalorder %s324, %s325
      %p336 = scmp.eq.s32.totalorder %s44, 0
      %p337 = por %p335, %p336
      %p338 = scmp.ne.s32.totalorder %s324, %s325
      %p339 = scmp.eq.s32.totalorder %s45, 1
      %p340 = por %p338, %p339
      %p342 = scmp.ne.s32.totalorder %s325, %s341
      %p343 = scmp.eq.s32.totalorder %s45, 0
      %p344 = por %p342, %p343
      %s345 = ssub.s32 %s47, %s54
      %p346 = scmp.eq.s32.totalorder %s345, 0
      %s348 = sadd.s32 %s347, 1
      %s349 = scalar_select %p346, %s347, %s348
      %p352 = pneg %p346
      %p353 = scmp.eq.s32.totalorder %s39, 1
      %p354 = por %p352, %p353
      %p355 = scmp.ne.s32.totalorder %s347, %s350
      %p356 = scmp.eq.s32.totalorder %s39, 0
      %p357 = por %p355, %p356
      %p358 = scmp.ne.s32.totalorder %s347, %s350
      %p359 = scmp.eq.s32.totalorder %s44, 1
      %p360 = por %p358, %p359
      %p361 = scmp.ne.s32.totalorder %s350, %s351
      %p362 = scmp.eq.s32.totalorder %s44, 0
      %p363 = por %p361, %p362
      %p364 = scmp.ne.s32.totalorder %s350, %s351
      %p365 = scmp.eq.s32.totalorder %s45, 1
      %p366 = por %p364, %p365
      %p368 = scmp.ne.s32.totalorder %s351, %s367
      %p369 = scmp.eq.s32.totalorder %s45, 0
      %p370 = por %p368, %p369
      %s371 = ssub.s32 %s47, %s54
      %p372 = scmp.eq.s32.totalorder %s371, 0
      %s374 = sadd.s32 %s373, 1
      %s375 = scalar_select %p372, %s373, %s374
      %p378 = pneg %p372
      %p379 = scmp.eq.s32.totalorder %s39, 1
      %p380 = por %p378, %p379
      %p381 = scmp.ne.s32.totalorder %s373, %s376
      %p382 = scmp.eq.s32.totalorder %s39, 0
      %p383 = por %p381, %p382
      %p384 = scmp.ne.s32.totalorder %s373, %s376
      %p385 = scmp.eq.s32.totalorder %s44, 1
      %p386 = por %p384, %p385
      %p387 = scmp.ne.s32.totalorder %s376, %s377
      %p388 = scmp.eq.s32.totalorder %s44, 0
      %p389 = por %p387, %p388
      %p390 = scmp.ne.s32.totalorder %s376, %s377
      %p391 = scmp.eq.s32.totalorder %s45, 1
      %p392 = por %p390, %p391
      %p394 = scmp.ne.s32.totalorder %s377, %s393
      %p395 = scmp.eq.s32.totalorder %s45, 0
      %p396 = por %p394, %p395
      %s397 = ssub.s32 %s46, %s58
      %p398 = scmp.eq.s32.totalorder %s397, 0
      %s400 = sadd.s32 %s399, 1
      %s401 = scalar_select %p398, %s399, %s400
      %p404 = pneg %p398
      %p405 = scmp.eq.s32.totalorder %s39, 1
      %p406 = por %p404, %p405
      %p407 = scmp.ne.s32.totalorder %s399, %s402
      %p408 = scmp.eq.s32.totalorder %s39, 0
      %p409 = por %p407, %p408
      %p410 = scmp.ne.s32.totalorder %s399, %s402
      %p411 = scmp.eq.s32.totalorder %s44, 1
      %p412 = por %p410, %p411
      %p413 = scmp.ne.s32.totalorder %s402, %s403
      %p414 = scmp.eq.s32.totalorder %s44, 0
      %p415 = por %p413, %p414
      %p416 = scmp.ne.s32.totalorder %s402, %s403
      %p417 = scmp.eq.s32.totalorder %s45, 1
      %p418 = por %p416, %p417
      %p420 = scmp.ne.s32.totalorder %s403, %s419
      %p421 = scmp.eq.s32.totalorder %s45, 0
      %p422 = por %p420, %p421
      %p423 = scmp.le.s32.totalorder 1, %s39
      %p424 = scmp.lt.s32.totalorder %s39, 3
      %p425 = pnand %p423, %p424
      %p426 = pneg %p425
      // Predicated region
      $region9: #{tpu_custom_call.1} parent=5 // pred_check
        _
      $region10: #{tpu_custom_call.1} parent=5 // pred_check_branch
        %428 = sbr.rel (%p425) target = $region12
      $region11: #{tpu_custom_call.1} parent=5 // pred_region
        %s429 = ssub.s32 %s39, 1
        // Predicated region
        $region13: #{tpu_custom_call.1} parent=11 // pred_check
          %p430 = pneg %p77
        $region14: #{tpu_custom_call.1} parent=11 // pred_check_branch
          %432 = sbr.rel (%p430) target = $region16
        $region15: #{tpu_custom_call.1} parent=11 // pred_region
          %s433 = smul.u32 2, %s48
          %s435 = ssub.s32 256, 256
          %436 = vsyncadd [#allocation3], %s435
          %s437 = smul.addr %s433, 128
          %s438 = scalar_lea.hbm %s0, %s437
          %s439 = sshll.u32 [#allocation2], 4
          %s440 = int_to_ptr.vmem [resolvable:$true] %s439
          %445 = dma.hbm_to_vmem [thread:$0]  %s438, 256, %s440, [#allocation3], 128, 128, 8
        $region16: #{tpu_custom_call.1} parent=11 // pred_fallthru
          _
      $region12: #{tpu_custom_call.1} parent=5 // pred_fallthru
        _
      %p446 = scmp.lt.s32.totalorder %s39, 2
      // Predicated region
      $region17: #{tpu_custom_call.1} parent=5 // pred_check
        %p447 = pneg %p446
      $region18: #{tpu_custom_call.1} parent=5 // pred_check_branch
        %449 = sbr.rel (%p447) target = $region20
      $region19: #{tpu_custom_call.1} parent=5 // pred_region
        // Predicated region
        $region21: #{tpu_custom_call.1} parent=19 // pred_check
          %p450 = pneg %p97
        $region22: #{tpu_custom_call.1} parent=19 // pred_check_branch
          %452 = sbr.rel (%p450) target = $region24
        $region23: #{tpu_custom_call.1} parent=19 // pred_region
          %s453 = sand.u32 %s39, 1
          %s454 = scalar_lea.sflag [#allocation6], %s453
          %s455 = sand.u32 %s87, 1
          %s456 = smul.addr %s455, 16
          %s457 = scalar_lea.vmem [#allocation5], %s456
          %s459 = ssub.s32 256, 256
          %460 = vsyncadd %s454, %s459
          %s461 = smul.addr %s47, 4
          %s462 = smul.addr %s461, 64
          %s463 = scalar_lea.hbm %s1, %s462
          %s464 = sshll.u32 %s457, 4
          %s465 = int_to_ptr.vmem [resolvable:$true] %s464
          %470 = dma.hbm_to_vmem [thread:$0]  %s463, 256, %s465, %s454, 64, 64, 4
        $region24: #{tpu_custom_call.1} parent=19 // pred_fallthru
          _
        // Predicated region
        $region25: #{tpu_custom_call.1} parent=19 // pred_check
          %p471 = pneg %p123
        $region26: #{tpu_custom_call.1} parent=19 // pred_check_branch
          %473 = sbr.rel (%p471) target = $region28
        $region27: #{tpu_custom_call.1} parent=19 // pred_region
          %s474 = sand.u32 %s39, 1
          %s475 = scalar_lea.sflag [#allocation6], %s474
          %s476 = sand.u32 %s113, 1
          %s477 = smul.addr %s476, 16
          %s478 = scalar_lea.vmem [#allocation7], %s477
          %s480 = ssub.s32 256, 256
          %481 = vsyncadd %s475, %s480
          %s482 = smul.addr %s47, 4
          %s483 = smul.addr %s482, 64
          %s484 = scalar_lea.hbm %s2, %s483
          %s485 = sshll.u32 %s478, 4
          %s486 = int_to_ptr.vmem [resolvable:$true] %s485
          %491 = dma.hbm_to_vmem [thread:$0]  %s484, 256, %s486, %s475, 64, 64, 4
        $region28: #{tpu_custom_call.1} parent=19 // pred_fallthru
          _
        // Predicated region
        $region29: #{tpu_custom_call.1} parent=19 // pred_check
          %p492 = pneg %p149
        $region30: #{tpu_custom_call.1} parent=19 // pred_check_branch
          %494 = sbr.rel (%p492) target = $region32
        $region31: #{tpu_custom_call.1} parent=19 // pred_region
          %s495 = sand.u32 %s39, 1
          %s496 = scalar_lea.sflag [#allocation9], %s495
          %s497 = sand.u32 %s139, 1
          %s498 = smul.addr %s497, 16
          %s499 = scalar_lea.vmem [#allocation8], %s498
          %s501 = ssub.s32 256, 256
          %502 = vsyncadd %s496, %s501
          %s503 = smul.addr %s47, 4
          %s504 = smul.addr %s503, 64
          %s505 = scalar_lea.hbm %s3, %s504
          %s506 = sshll.u32 %s499, 4
          %s507 = int_to_ptr.vmem [resolvable:$true] %s506
          %512 = dma.hbm_to_vmem [thread:$0]  %s505, 256, %s507, %s496, 64, 64, 4
        $region32: #{tpu_custom_call.1} parent=19 // pred_fallthru
          _
        // Predicated region
        $region33: #{tpu_custom_call.1} parent=19 // pred_check
          %p513 = pneg %p175
        $region34: #{tpu_custom_call.1} parent=19 // pred_check_branch
          %515 = sbr.rel (%p513) target = $region36
        $region35: #{tpu_custom_call.1} parent=19 // pred_region
          %s516 = sand.u32 %s39, 1
          %s517 = scalar_lea.sflag [#allocation9], %s516
          %s518 = sand.u32 %s165, 1
          %s519 = smul.addr %s518, 16
          %s520 = scalar_lea.vmem [#allocation10], %s519
          %s522 = ssub.s32 256, 256
          %523 = vsyncadd %s517, %s522
          %s524 = smul.addr %s47, 4
          %s525 = smul.addr %s524, 64
          %s526 = scalar_lea.hbm %s4, %s525
          %s527 = sshll.u32 %s520, 4
          %s528 = int_to_ptr.vmem [resolvable:$true] %s527
          %533 = dma.hbm_to_vmem [thread:$0]  %s526, 256, %s528, %s517, 64, 64, 4
        $region36: #{tpu_custom_call.1} parent=19 // pred_fallthru
          _
        // Predicated region
        $region37: #{tpu_custom_call.1} parent=19 // pred_check
          %p534 = pneg %p201
        $region38: #{tpu_custom_call.1} parent=19 // pred_check_branch
          %536 = sbr.rel (%p534) target = $region40
        $region39: #{tpu_custom_call.1} parent=19 // pred_region
          %s537 = sand.u32 %s39, 1
          %s538 = scalar_lea.sflag [#allocation12], %s537
          %s539 = sand.u32 %s191, 1
          %s540 = smul.addr %s539, 16
          %s541 = scalar_lea.vmem [#allocation11], %s540
          %s543 = ssub.s32 256, 256
          %544 = vsyncadd %s538, %s543
          %s545 = smul.addr %s47, 4
          %s546 = smul.addr %s545, 64
          %s547 = scalar_lea.hbm %s5, %s546
          %s548 = sshll.u32 %s541, 4
          %s549 = int_to_ptr.vmem [resolvable:$true] %s548
          %554 = dma.hbm_to_vmem [thread:$0]  %s547, 256, %s549, %s538, 64, 64, 4
        $region40: #{tpu_custom_call.1} parent=19 // pred_fallthru
          _
        // Predicated region
        $region41: #{tpu_custom_call.1} parent=19 // pred_check
          %p555 = pneg %p227
        $region42: #{tpu_custom_call.1} parent=19 // pred_check_branch
          %557 = sbr.rel (%p555) target = $region44
        $region43: #{tpu_custom_call.1} parent=19 // pred_region
          %s558 = sand.u32 %s39, 1
          %s559 = scalar_lea.sflag [#allocation12], %s558
          %s560 = sand.u32 %s217, 1
          %s561 = scalar_lea.vmem [#allocation13], %s560
          %s563 = ssub.s32 16, 16
          %564 = vsyncadd %s559, %s563
          %s565 = smul.addr %s47, 16
          %s566 = scalar_lea.hbm %s6, %s565
          %s568 = sshll.u32 %s561, 4
          %s569 = int_to_ptr.vmem [resolvable:$true] %s568
          %571 = dma.hbm_to_vmem [thread:$0]  %s566, 16, %s569, %s559
        $region44: #{tpu_custom_call.1} parent=19 // pred_fallthru
          _
        // Predicated region
        $region45: #{tpu_custom_call.1} parent=19 // pred_check
          %p572 = pneg %p253
        $region46: #{tpu_custom_call.1} parent=19 // pred_check_branch
          %574 = sbr.rel (%p572) target = $region48
        $region47: #{tpu_custom_call.1} parent=19 // pred_region
          %s575 = sand.u32 %s39, 1
          %s576 = scalar_lea.sflag [#allocation15], %s575
          %s577 = sand.u32 %s243, 1
          %s578 = smul.addr %s577, 32
          %s579 = scalar_lea.vmem [#allocation14], %s578
          %s581 = ssub.s32 512, 512
          %582 = vsyncadd %s576, %s581
          %s583 = smul.addr %s47, 8
          %s584 = smul.addr %s583, 64
          %s585 = scalar_lea.hbm %s7, %s584
          %s586 = sshll.u32 %s579, 4
          %s587 = int_to_ptr.vmem [resolvable:$true] %s586
          %592 = dma.hbm_to_vmem [thread:$0]  %s585, 512, %s587, %s576, 64, 64, 4
        $region48: #{tpu_custom_call.1} parent=19 // pred_fallthru
          _
        // Predicated region
        $region49: #{tpu_custom_call.1} parent=19 // pred_check
          %p593 = pneg %p279
        $region50: #{tpu_custom_call.1} parent=19 // pred_check_branch
          %595 = sbr.rel (%p593) target = $region52
        $region51: #{tpu_custom_call.1} parent=19 // pred_region
          %s596 = sand.u32 %s39, 1
          %s597 = scalar_lea.sflag [#allocation15], %s596
          %s598 = sand.u32 %s269, 1
          %s599 = scalar_lea.vmem [#allocation16], %s598
          %s601 = ssub.s32 16, 16
          %602 = vsyncadd %s597, %s601
          %s603 = smul.addr %s47, 16
          %s604 = scalar_lea.hbm %s8, %s603
          %s606 = sshll.u32 %s599, 4
          %s607 = int_to_ptr.vmem [resolvable:$true] %s606
          %609 = dma.hbm_to_vmem [thread:$0]  %s604, 16, %s607, %s597
        $region52: #{tpu_custom_call.1} parent=19 // pred_fallthru
          _
        // Predicated region
        $region53: #{tpu_custom_call.1} parent=19 // pred_check
          %p610 = pneg %p305
        $region54: #{tpu_custom_call.1} parent=19 // pred_check_branch
          %612 = sbr.rel (%p610) target = $region56
        $region55: #{tpu_custom_call.1} parent=19 // pred_region
          %s613 = sand.u32 %s39, 1
          %s614 = scalar_lea.sflag [#allocation18], %s613
          %s615 = sand.u32 %s295, 1
          %s616 = scalar_lea.vmem [#allocation17], %s615
          %s618 = ssub.s32 16, 16
          %619 = vsyncadd %s614, %s618
          %s620 = smul.addr %s47, 16
          %s621 = scalar_lea.hbm %s9, %s620
          %s623 = sshll.u32 %s616, 4
          %s624 = int_to_ptr.vmem [resolvable:$true] %s623
          %626 = dma.hbm_to_vmem [thread:$0]  %s621, 16, %s624, %s614
        $region56: #{tpu_custom_call.1} parent=19 // pred_fallthru
          _
        // Predicated region
        $region57: #{tpu_custom_call.1} parent=19 // pred_check
          %p627 = pneg %p331
        $region58: #{tpu_custom_call.1} parent=19 // pred_check_branch
          %629 = sbr.rel (%p627) target = $region60
        $region59: #{tpu_custom_call.1} parent=19 // pred_region
          %s630 = sand.u32 %s39, 1
          %s631 = scalar_lea.sflag [#allocation18], %s630
          %s632 = sand.u32 %s321, 1
          %s633 = scalar_lea.vmem [#allocation19], %s632
          %s635 = ssub.s32 16, 16
          %636 = vsyncadd %s631, %s635
          %s637 = smul.addr %s47, 16
          %s638 = scalar_lea.hbm %s10, %s637
          %s640 = sshll.u32 %s633, 4
          %s641 = int_to_ptr.vmem [resolvable:$true] %s640
          %643 = dma.hbm_to_vmem [thread:$0]  %s638, 16, %s641, %s631
        $region60: #{tpu_custom_call.1} parent=19 // pred_fallthru
          _
        // Predicated region
        $region61: #{tpu_custom_call.1} parent=19 // pred_check
          %p644 = pneg %p357
        $region62: #{tpu_custom_call.1} parent=19 // pred_check_branch
          %646 = sbr.rel (%p644) target = $region64
        $region63: #{tpu_custom_call.1} parent=19 // pred_region
          %s647 = sand.u32 %s39, 1
          %s648 = scalar_lea.sflag [#allocation21], %s647
          %s649 = sand.u32 %s347, 1
          %s650 = scalar_lea.vmem [#allocation20], %s649
          %s652 = ssub.s32 16, 16
          %653 = vsyncadd %s648, %s652
          %s654 = smul.addr %s47, 16
          %s655 = scalar_lea.hbm %s11, %s654
          %s657 = sshll.u32 %s650, 4
          %s658 = int_to_ptr.vmem [resolvable:$true] %s657
          %660 = dma.hbm_to_vmem [thread:$0]  %s655, 16, %s658, %s648
        $region64: #{tpu_custom_call.1} parent=19 // pred_fallthru
          _
        // Predicated region
        $region65: #{tpu_custom_call.1} parent=19 // pred_check
          %p661 = pneg %p383
        $region66: #{tpu_custom_call.1} parent=19 // pred_check_branch
          %663 = sbr.rel (%p661) target = $region68
        $region67: #{tpu_custom_call.1} parent=19 // pred_region
          %s664 = sand.u32 %s39, 1
          %s665 = scalar_lea.sflag [#allocation21], %s664
          %s666 = sand.u32 %s373, 1
          %s667 = scalar_lea.vmem [#allocation22], %s666
          %s669 = ssub.s32 16, 16
          %670 = vsyncadd %s665, %s669
          %s671 = smul.addr %s47, 16
          %s672 = scalar_lea.hbm %s12, %s671
          %s674 = sshll.u32 %s667, 4
          %s675 = int_to_ptr.vmem [resolvable:$true] %s674
          %677 = dma.hbm_to_vmem [thread:$0]  %s672, 16, %s675, %s665
        $region68: #{tpu_custom_call.1} parent=19 // pred_fallthru
          _
      $region20: #{tpu_custom_call.1} parent=5 // pred_fallthru
        _
      %p678 = scmp.le.s32.totalorder 1, %s39
      %p679 = scmp.lt.s32.totalorder %s39, 3
      %p680 = pnand %p678, %p679
      %p681 = pneg %p680
      // Predicated region
      $region69: #{tpu_custom_call.1} parent=5 // pred_check
        _
      $region70: #{tpu_custom_call.1} parent=5 // pred_check_branch
        %683 = sbr.rel (%p680) target = $region72
      $region71: #{tpu_custom_call.1} parent=5 // pred_region
        %s684 = ssub.s32 %s39, 1
        // Predicated region
        $region73: #{tpu_custom_call.1} parent=71 // pred_check
          %p685 = pneg %p77
        $region74: #{tpu_custom_call.1} parent=71 // pred_check_branch
          %687 = sbr.rel (%p685) target = $region76
        $region75: #{tpu_custom_call.1} parent=71 // pred_region
          %688 = dma.done [#allocation3], 256
        $region76: #{tpu_custom_call.1} parent=71 // pred_fallthru
          _
        %s689 = sand.u32 %s44, 1
        %s690 = scalar_lea.sflag [#allocation6], %s689
        %s691 = sand.u32 %s90, 1
        %s692 = smul.addr %s691, 16
        %s693 = scalar_lea.vmem [#allocation5], %s692
        // Predicated region
        $region77: #{tpu_custom_call.1} parent=71 // pred_check
          %p694 = pneg %p103
        $region78: #{tpu_custom_call.1} parent=71 // pred_check_branch
          %696 = sbr.rel (%p694) target = $region80
        $region79: #{tpu_custom_call.1} parent=71 // pred_region
          %697 = dma.done %s690, 256
        $region80: #{tpu_custom_call.1} parent=71 // pred_fallthru
          _
        %s698 = sand.u32 %s44, 1
        %s699 = scalar_lea.sflag [#allocation6], %s698
        %s700 = sand.u32 %s116, 1
        %s701 = smul.addr %s700, 16
        %s702 = scalar_lea.vmem [#allocation7], %s701
        // Predicated region
        $region81: #{tpu_custom_call.1} parent=71 // pred_check
          %p703 = pneg %p129
        $region82: #{tpu_custom_call.1} parent=71 // pred_check_branch
          %705 = sbr.rel (%p703) target = $region84
        $region83: #{tpu_custom_call.1} parent=71 // pred_region
          %706 = dma.done %s699, 256
        $region84: #{tpu_custom_call.1} parent=71 // pred_fallthru
          _
        %s707 = sand.u32 %s44, 1
        %s708 = scalar_lea.sflag [#allocation9], %s707
        %s709 = sand.u32 %s142, 1
        %s710 = smul.addr %s709, 16
        %s711 = scalar_lea.vmem [#allocation8], %s710
        // Predicated region
        $region85: #{tpu_custom_call.1} parent=71 // pred_check
          %p712 = pneg %p155
        $region86: #{tpu_custom_call.1} parent=71 // pred_check_branch
          %714 = sbr.rel (%p712) target = $region88
        $region87: #{tpu_custom_call.1} parent=71 // pred_region
          %715 = dma.done %s708, 256
        $region88: #{tpu_custom_call.1} parent=71 // pred_fallthru
          _
        %s716 = sand.u32 %s44, 1
        %s717 = scalar_lea.sflag [#allocation9], %s716
        %s718 = sand.u32 %s168, 1
        %s719 = smul.addr %s718, 16
        %s720 = scalar_lea.vmem [#allocation10], %s719
        // Predicated region
        $region89: #{tpu_custom_call.1} parent=71 // pred_check
          %p721 = pneg %p181
        $region90: #{tpu_custom_call.1} parent=71 // pred_check_branch
          %723 = sbr.rel (%p721) target = $region92
        $region91: #{tpu_custom_call.1} parent=71 // pred_region
          %724 = dma.done %s717, 256
        $region92: #{tpu_custom_call.1} parent=71 // pred_fallthru
          _
        %s725 = sand.u32 %s44, 1
        %s726 = scalar_lea.sflag [#allocation12], %s725
        %s727 = sand.u32 %s194, 1
        %s728 = smul.addr %s727, 16
        %s729 = scalar_lea.vmem [#allocation11], %s728
        // Predicated region
        $region93: #{tpu_custom_call.1} parent=71 // pred_check
          %p730 = pneg %p207
        $region94: #{tpu_custom_call.1} parent=71 // pred_check_branch
          %732 = sbr.rel (%p730) target = $region96
        $region95: #{tpu_custom_call.1} parent=71 // pred_region
          %733 = dma.done %s726, 256
        $region96: #{tpu_custom_call.1} parent=71 // pred_fallthru
          _
        %s734 = sand.u32 %s44, 1
        %s735 = scalar_lea.sflag [#allocation12], %s734
        %s736 = sand.u32 %s220, 1
        %s737 = scalar_lea.vmem [#allocation13], %s736
        // Predicated region
        $region97: #{tpu_custom_call.1} parent=71 // pred_check
          %p738 = pneg %p233
        $region98: #{tpu_custom_call.1} parent=71 // pred_check_branch
          %740 = sbr.rel (%p738) target = $region100
        $region99: #{tpu_custom_call.1} parent=71 // pred_region
          %741 = dma.done %s735, 16
        $region100: #{tpu_custom_call.1} parent=71 // pred_fallthru
          _
        %s742 = sand.u32 %s44, 1
        %s743 = scalar_lea.sflag [#allocation15], %s742
        %s744 = sand.u32 %s246, 1
        %s745 = smul.addr %s744, 32
        %s746 = scalar_lea.vmem [#allocation14], %s745
        // Predicated region
        $region101: #{tpu_custom_call.1} parent=71 // pred_check
          %p747 = pneg %p259
        $region102: #{tpu_custom_call.1} parent=71 // pred_check_branch
          %749 = sbr.rel (%p747) target = $region104
        $region103: #{tpu_custom_call.1} parent=71 // pred_region
          %750 = dma.done %s743, 512
        $region104: #{tpu_custom_call.1} parent=71 // pred_fallthru
          _
        %s751 = sand.u32 %s44, 1
        %s752 = scalar_lea.sflag [#allocation15], %s751
        %s753 = sand.u32 %s272, 1
        %s754 = scalar_lea.vmem [#allocation16], %s753
        // Predicated region
        $region105: #{tpu_custom_call.1} parent=71 // pred_check
          %p755 = pneg %p285
        $region106: #{tpu_custom_call.1} parent=71 // pred_check_branch
          %757 = sbr.rel (%p755) target = $region108
        $region107: #{tpu_custom_call.1} parent=71 // pred_region
          %758 = dma.done %s752, 16
        $region108: #{tpu_custom_call.1} parent=71 // pred_fallthru
          _
        %s759 = sand.u32 %s44, 1
        %s760 = scalar_lea.sflag [#allocation18], %s759
        %s761 = sand.u32 %s298, 1
        %s762 = scalar_lea.vmem [#allocation17], %s761
        // Predicated region
        $region109: #{tpu_custom_call.1} parent=71 // pred_check
          %p763 = pneg %p311
        $region110: #{tpu_custom_call.1} parent=71 // pred_check_branch
          %765 = sbr.rel (%p763) target = $region112
        $region111: #{tpu_custom_call.1} parent=71 // pred_region
          %766 = dma.done %s760, 16
        $region112: #{tpu_custom_call.1} parent=71 // pred_fallthru
          _
        %s767 = sand.u32 %s44, 1
        %s768 = scalar_lea.sflag [#allocation18], %s767
        %s769 = sand.u32 %s324, 1
        %s770 = scalar_lea.vmem [#allocation19], %s769
        // Predicated region
        $region113: #{tpu_custom_call.1} parent=71 // pred_check
          %p771 = pneg %p337
        $region114: #{tpu_custom_call.1} parent=71 // pred_check_branch
          %773 = sbr.rel (%p771) target = $region116
        $region115: #{tpu_custom_call.1} parent=71 // pred_region
          %774 = dma.done %s768, 16
        $region116: #{tpu_custom_call.1} parent=71 // pred_fallthru
          _
        %s775 = sand.u32 %s44, 1
        %s776 = scalar_lea.sflag [#allocation21], %s775
        %s777 = sand.u32 %s350, 1
        %s778 = scalar_lea.vmem [#allocation20], %s777
        // Predicated region
        $region117: #{tpu_custom_call.1} parent=71 // pred_check
          %p779 = pneg %p363
        $region118: #{tpu_custom_call.1} parent=71 // pred_check_branch
          %781 = sbr.rel (%p779) target = $region120
        $region119: #{tpu_custom_call.1} parent=71 // pred_region
          %782 = dma.done %s776, 16
        $region120: #{tpu_custom_call.1} parent=71 // pred_fallthru
          _
        %s783 = sand.u32 %s44, 1
        %s784 = scalar_lea.sflag [#allocation21], %s783
        %s785 = sand.u32 %s376, 1
        %s786 = scalar_lea.vmem [#allocation22], %s785
        // Predicated region
        $region121: #{tpu_custom_call.1} parent=71 // pred_check
          %p787 = pneg %p389
        $region122: #{tpu_custom_call.1} parent=71 // pred_check_branch
          %789 = sbr.rel (%p787) target = $region124
        $region123: #{tpu_custom_call.1} parent=71 // pred_region
          %790 = dma.done %s784, 16
        $region124: #{tpu_custom_call.1} parent=71 // pred_fallthru
          _
        %p791 = pneg %p77
        %p792 = pneg %p74
        %s793 = sand.u32 %s44, 1
        %s794 = scalar_lea.sflag [#allocation6], %s793
        %s795 = sand.u32 %s90, 1
        %s796 = smul.addr %s795, 16
        %s797 = scalar_lea.vmem [#allocation5], %s796
        %p798 = pneg %p103
        %p799 = pneg %p100
        %s800 = sand.u32 %s44, 1
        %s801 = scalar_lea.sflag [#allocation6], %s800
        %s802 = sand.u32 %s116, 1
        %s803 = smul.addr %s802, 16
        %s804 = scalar_lea.vmem [#allocation7], %s803
        %p805 = pneg %p129
        %p806 = pneg %p126
        %s807 = sand.u32 %s44, 1
        %s808 = scalar_lea.sflag [#allocation9], %s807
        %s809 = sand.u32 %s142, 1
        %s810 = smul.addr %s809, 16
        %s811 = scalar_lea.vmem [#allocation8], %s810
        %p812 = pneg %p155
        %p813 = pneg %p152
        %s814 = sand.u32 %s44, 1
        %s815 = scalar_lea.sflag [#allocation9], %s814
        %s816 = sand.u32 %s168, 1
        %s817 = smul.addr %s816, 16
        %s818 = scalar_lea.vmem [#allocation10], %s817
        %p819 = pneg %p181
        %p820 = pneg %p178
        %s821 = sand.u32 %s44, 1
        %s822 = scalar_lea.sflag [#allocation12], %s821
        %s823 = sand.u32 %s194, 1
        %s824 = smul.addr %s823, 16
        %s825 = scalar_lea.vmem [#allocation11], %s824
        %p826 = pneg %p207
        %p827 = pneg %p204
        %s828 = sand.u32 %s44, 1
        %s829 = scalar_lea.sflag [#allocation12], %s828
        %s830 = sand.u32 %s220, 1
        %s831 = scalar_lea.vmem [#allocation13], %s830
        %p832 = pneg %p233
        %p833 = pneg %p230
        %s834 = sand.u32 %s44, 1
        %s835 = scalar_lea.sflag [#allocation15], %s834
        %s836 = sand.u32 %s246, 1
        %s837 = smul.addr %s836, 32
        %s838 = scalar_lea.vmem [#allocation14], %s837
        %p839 = pneg %p259
        %p840 = pneg %p256
        %s841 = sand.u32 %s44, 1
        %s842 = scalar_lea.sflag [#allocation15], %s841
        %s843 = sand.u32 %s272, 1
        %s844 = scalar_lea.vmem [#allocation16], %s843
        %p845 = pneg %p285
        %p846 = pneg %p282
        %s847 = sand.u32 %s44, 1
        %s848 = scalar_lea.sflag [#allocation18], %s847
        %s849 = sand.u32 %s298, 1
        %s850 = scalar_lea.vmem [#allocation17], %s849
        %p851 = pneg %p311
        %p852 = pneg %p308
        %s853 = sand.u32 %s44, 1
        %s854 = scalar_lea.sflag [#allocation18], %s853
        %s855 = sand.u32 %s324, 1
        %s856 = scalar_lea.vmem [#allocation19], %s855
        %p857 = pneg %p337
        %p858 = pneg %p334
        %s859 = sand.u32 %s44, 1
        %s860 = scalar_lea.sflag [#allocation21], %s859
        %s861 = sand.u32 %s350, 1
        %s862 = scalar_lea.vmem [#allocation20], %s861
        %p863 = pneg %p363
        %p864 = pneg %p360
        %s865 = sand.u32 %s44, 1
        %s866 = scalar_lea.sflag [#allocation21], %s865
        %s867 = sand.u32 %s376, 1
        %s868 = scalar_lea.vmem [#allocation22], %s867
        %p869 = pneg %p389
        %p870 = pneg %p386
        %p871 = pneg %p415
        %p872 = pneg %p412
        %s873 = smul.u32 2, %s48
        %s874 = smul.u32 2, %s48
        %p876 = scmp.eq.s32.totalorder %s49, 0
        // Predicated region
        $region125: #{tpu_custom_call.1} parent=71 // pred_check
          %p877 = pneg %p876
        $region126: #{tpu_custom_call.1} parent=71 // pred_check_branch
          %879 = sbr.rel (%p877) target = $region128
        $region127: #{tpu_custom_call.1} parent=71 // pred_region
          %v880 = vld [vmem:[#allocation2] sm:$0xff]
          %v881 = vld [vmem:[#allocation2 + $0x8] sm:$0xff]
          %vm882 = vcmask 261120
          %883 = vst.msk [vmem:[#allocation23] sm:$0xff] %vm882, %v880
          %884 = vst.msk [vmem:[#allocation23 + $0x8] sm:$0xff] %vm882, %v881
        $region128: #{tpu_custom_call.1} parent=71 // pred_fallthru
          _
        %v885 = vld [vmem:[#allocation23] sm:$0xff]
        %v886 = vld [vmem:[#allocation23 + $0x8] sm:$0xff]
        %v887 = vpack.c.bf16 %v886, %v885
        %v888 = vld [vmem:[%s693] sm:$0xf]
        %v889 = vld [vmem:[%s693 + $0x4] sm:$0xf]
        %v890 = vld [vmem:[%s693 + $0x8] sm:$0xf]
        %v891 = vld [vmem:[%s693 + $0xc] sm:$0xf]
        %v892 = vld [vmem:[%s702] sm:$0xf]
        %v893 = vld [vmem:[%s702 + $0x4] sm:$0xf]
        %v894 = vld [vmem:[%s702 + $0x8] sm:$0xf]
        %v895 = vld [vmem:[%s702 + $0xc] sm:$0xf]
        %v896 = vld [vmem:[%s711] sm:$0xf]
        %v897 = vld [vmem:[%s711 + $0x4] sm:$0xf]
        %v898 = vld [vmem:[%s711 + $0x8] sm:$0xf]
        %v899 = vld [vmem:[%s711 + $0xc] sm:$0xf]
        %v900 = vld [vmem:[%s720] sm:$0xf]
        %v901 = vld [vmem:[%s720 + $0x4] sm:$0xf]
        %v902 = vld [vmem:[%s720 + $0x8] sm:$0xf]
        %v903 = vld [vmem:[%s720 + $0xc] sm:$0xf]
        %v908 = vunpack.c.l.b16 %v888
        %v909 = vunpack.c.l.b16 %v889
        %v910 = vunpack.c.l.b16 %v890
        %v911 = vunpack.c.l.b16 %v891
        %v912 = vpack.c.b16 %v909, %v908
        %v913 = vpack.c.b16 %v911, %v910
        %vm916 = vcmask 261120
        %v918 = vsel %vm916, %v887, 0
        %920 = vmatprep.subr.bf16.mxu0 0
        %921 = vmatpush1.bf16.msra.mxu0 %v912
        %922 = vmatprep.subr.bf16.mxu0 0
        %923 = vmatpush1.bf16.msra.mxu0 %v913
        %924 = vmatprep.subr.bf16.mxu0 0
        %925 = vmatpush1.bf16.msra.mxu0 0
        %926 = vmatprep.subr.bf16.mxu0 0
        %927 = vmatpush1.bf16.msra.mxu0 0
        %928 = vmatprep.subr.bf16.mxu0 0
        %929 = vmatpush1.bf16.msra.mxu0 0
        %930 = vmatprep.subr.bf16.mxu0 0
        %931 = vmatpush1.bf16.msra.mxu0 0
        %932 = vmatprep.subr.bf16.mxu0 0
        %933 = vmatpush1.bf16.msra.mxu0 0
        %934 = vmatprep.subr.bf16.mxu0 0
        %935 = vmatpush1.bf16.msra.mxu0 0
        %936 = vmatprep.subr.bf16.mxu0 0
        %937 = vmatpush1.bf16.msra.mxu0 0
        %938 = vmatprep.subr.bf16.mxu0 0
        %939 = vmatpush1.bf16.msra.mxu0 0
        %940 = vmatprep.subr.bf16.mxu0 0
        %941 = vmatpush1.bf16.msra.mxu0 0
        %942 = vmatprep.subr.bf16.mxu0 0
        %943 = vmatpush1.bf16.msra.mxu0 0
        %944 = vmatprep.subr.bf16.mxu0 0
        %945 = vmatpush1.bf16.msra.mxu0 0
        %946 = vmatprep.subr.bf16.mxu0 0
        %947 = vmatpush1.bf16.msra.mxu0 0
        %948 = vmatprep.subr.bf16.mxu0 0
        %949 = vmatpush1.bf16.msra.mxu0 0
        %950 = vmatprep.subr.bf16.mxu0 0
        %951 = vmatpush1.bf16.msra.mxu0 0
        %952 = vmatprep.mubr.bf16.mxu0 0
        %953 = vmatmul.mubr.bf16.gmra.mrb[0].mxu0 %v918
        %v954 = vpop.f32.mrb[0].mxu0
        %v955 = vadd.f32 0.0, %v954
        %v956 = vpop.f32.mrb[0].mxu0
        %v957 = vpop.f32.mrb[0].mxu0
        %v958 = vadd.f32 0.0, %v957
        %v959 = vpop.f32.mrb[0].mxu0
        %960 = vdwg.mxu0
        %v961 = vmul.f32 %v955, 0.35355338
        %v962 = vmul.f32 %v958, 0.35355338
        %v967 = vunpack.c.l.b16 %v892
        %v968 = vunpack.c.l.b16 %v893
        %v969 = vunpack.c.l.b16 %v894
        %v970 = vunpack.c.l.b16 %v895
        %v971 = vpack.c.b16 %v968, %v967
        %v972 = vpack.c.b16 %v970, %v969
        %975 = vmatprep.subr.bf16.mxu0 0
        %976 = vmatpush1.bf16.msra.mxu0 %v971
        %977 = vmatprep.subr.bf16.mxu0 0
        %978 = vmatpush1.bf16.msra.mxu0 %v972
        %979 = vmatprep.subr.bf16.mxu0 0
        %980 = vmatpush1.bf16.msra.mxu0 0
        %981 = vmatprep.subr.bf16.mxu0 0
        %982 = vmatpush1.bf16.msra.mxu0 0
        %983 = vmatprep.subr.bf16.mxu0 0
        %984 = vmatpush1.bf16.msra.mxu0 0
        %985 = vmatprep.subr.bf16.mxu0 0
        %986 = vmatpush1.bf16.msra.mxu0 0
        %987 = vmatprep.subr.bf16.mxu0 0
        %988 = vmatpush1.bf16.msra.mxu0 0
        %989 = vmatprep.subr.bf16.mxu0 0
        %990 = vmatpush1.bf16.msra.mxu0 0
        %991 = vmatprep.subr.bf16.mxu0 0
        %992 = vmatpush1.bf16.msra.mxu0 0
        %993 = vmatprep.subr.bf16.mxu0 0
        %994 = vmatpush1.bf16.msra.mxu0 0
        %995 = vmatprep.subr.bf16.mxu0 0
        %996 = vmatpush1.bf16.msra.mxu0 0
        %997 = vmatprep.subr.bf16.mxu0 0
        %998 = vmatpush1.bf16.msra.mxu0 0
        %999 = vmatprep.subr.bf16.mxu0 0
        %1000 = vmatpush1.bf16.msra.mxu0 0
        %1001 = vmatprep.subr.bf16.mxu0 0
        %1002 = vmatpush1.bf16.msra.mxu0 0
        %1003 = vmatprep.subr.bf16.mxu0 0
        %1004 = vmatpush1.bf16.msra.mxu0 0
        %1005 = vmatprep.subr.bf16.mxu0 0
        %1006 = vmatpush1.bf16.msra.mxu0 0
        %1007 = vmatprep.mubr.bf16.mxu0 0
        %1008 = vmatmul.mubr.bf16.gmra.mrb[0].mxu0 %v918
        %v1009 = vpop.f32.mrb[0].mxu0
        %v1010 = vadd.f32 0.0, %v1009
        %v1011 = vpop.f32.mrb[0].mxu0
        %v1012 = vpop.f32.mrb[0].mxu0
        %v1013 = vadd.f32 0.0, %v1012
        %v1014 = vpop.f32.mrb[0].mxu0
        %1015 = vdwg.mxu0
        %v1020 = vunpack.c.l.b16 %v896
        %v1021 = vunpack.c.l.b16 %v897
        %v1022 = vunpack.c.l.b16 %v898
        %v1023 = vunpack.c.l.b16 %v899
        %v1024 = vpack.c.b16 %v1021, %v1020
        %v1025 = vpack.c.b16 %v1023, %v1022
        %1028 = vmatprep.subr.bf16.mxu0 0
        %1029 = vmatpush1.bf16.msra.mxu0 %v1024
        %1030 = vmatprep.subr.bf16.mxu0 0
        %1031 = vmatpush1.bf16.msra.mxu0 %v1025
        %1032 = vmatprep.subr.bf16.mxu0 0
        %1033 = vmatpush1.bf16.msra.mxu0 0
        %1034 = vmatprep.subr.bf16.mxu0 0
        %1035 = vmatpush1.bf16.msra.mxu0 0
        %1036 = vmatprep.subr.bf16.mxu0 0
        %1037 = vmatpush1.bf16.msra.mxu0 0
        %1038 = vmatprep.subr.bf16.mxu0 0
        %1039 = vmatpush1.bf16.msra.mxu0 0
        %1040 = vmatprep.subr.bf16.mxu0 0
        %1041 = vmatpush1.bf16.msra.mxu0 0
        %1042 = vmatprep.subr.bf16.mxu0 0
        %1043 = vmatpush1.bf16.msra.mxu0 0
        %1044 = vmatprep.subr.bf16.mxu0 0
        %1045 = vmatpush1.bf16.msra.mxu0 0
        %1046 = vmatprep.subr.bf16.mxu0 0
        %1047 = vmatpush1.bf16.msra.mxu0 0
        %1048 = vmatprep.subr.bf16.mxu0 0
        %1049 = vmatpush1.bf16.msra.mxu0 0
        %1050 = vmatprep.subr.bf16.mxu0 0
        %1051 = vmatpush1.bf16.msra.mxu0 0
        %1052 = vmatprep.subr.bf16.mxu0 0
        %1053 = vmatpush1.bf16.msra.mxu0 0
        %1054 = vmatprep.subr.bf16.mxu0 0
        %1055 = vmatpush1.bf16.msra.mxu0 0
        %1056 = vmatprep.subr.bf16.mxu0 0
        %1057 = vmatpush1.bf16.msra.mxu0 0
        %1058 = vmatprep.subr.bf16.mxu0 0
        %1059 = vmatpush1.bf16.msra.mxu0 0
        %1060 = vmatprep.mubr.bf16.mxu0 0
        %1061 = vmatmul.mubr.bf16.gmra.mrb[0].mxu0 %v918
        %v1062 = vpop.f32.mrb[0].mxu0
        %v1063 = vadd.f32 0.0, %v1062
        %v1064 = vpop.f32.mrb[0].mxu0
        %v1065 = vpop.f32.mrb[0].mxu0
        %v1066 = vadd.f32 0.0, %v1065
        %v1067 = vpop.f32.mrb[0].mxu0
        %1068 = vdwg.mxu0
        %1071 = vrot.lane.b32.xlu0 %v961, 120
        %v1072 = vpop.permute.xlu0 %1071
        %1073 = vrot.lane.b32.xlu0 %v962, 120
        %v1074 = vpop.permute.xlu0 %1073
        %1077 = vrot.lane.b32.xlu0 %v961, 112
        %v1078 = vpop.permute.xlu0 %1077
        %1079 = vrot.lane.b32.xlu0 %v962, 112
        %v1080 = vpop.permute.xlu0 %1079
        %1083 = vrot.lane.b32.xlu0 %v961, 104
        %v1084 = vpop.permute.xlu0 %1083
        %1085 = vrot.lane.b32.xlu0 %v962, 104
        %v1086 = vpop.permute.xlu0 %1085
        %v1089 = vpack.c.bf16 %v961, %v961
        %v1090 = vpack.c.bf16 %v962, %v962
        %v1091 = vpack.c.bf16 %v1072, %v1072
        %v1092 = vpack.c.bf16 %v1074, %v1074
        %v1093 = vpack.c.bf16 %v1078, %v1078
        %v1094 = vpack.c.bf16 %v1080, %v1080
        %v1095 = vpack.c.bf16 %v1084, %v1084
        %v1096 = vpack.c.bf16 %v1086, %v1086
        %1099 = vrot.lane.b32.xlu0 %v1010, 120
        %v1100 = vpop.permute.xlu0 %1099
        %1101 = vrot.lane.b32.xlu0 %v1013, 120
        %v1102 = vpop.permute.xlu0 %1101
        %1105 = vrot.lane.b32.xlu0 %v1010, 112
        %v1106 = vpop.permute.xlu0 %1105
        %1107 = vrot.lane.b32.xlu0 %v1013, 112
        %v1108 = vpop.permute.xlu0 %1107
        %1111 = vrot.lane.b32.xlu0 %v1010, 104
        %v1112 = vpop.permute.xlu0 %1111
        %1113 = vrot.lane.b32.xlu0 %v1013, 104
        %v1114 = vpop.permute.xlu0 %1113
        %v1117 = vpack.c.bf16 %v1010, %v1010
        %v1118 = vpack.c.bf16 %v1013, %v1013
        %v1119 = vpack.c.bf16 %v1100, %v1100
        %v1120 = vpack.c.bf16 %v1102, %v1102
        %v1121 = vpack.c.bf16 %v1106, %v1106
        %v1122 = vpack.c.bf16 %v1108, %v1108
        %v1123 = vpack.c.bf16 %v1112, %v1112
        %v1124 = vpack.c.bf16 %v1114, %v1114
        %1127 = vrot.lane.b32.xlu0 %v1063, 120
        %v1128 = vpop.permute.xlu0 %1127
        %1129 = vrot.lane.b32.xlu0 %v1066, 120
        %v1130 = vpop.permute.xlu0 %1129
        %1133 = vrot.lane.b32.xlu0 %v1063, 112
        %v1134 = vpop.permute.xlu0 %1133
        %1135 = vrot.lane.b32.xlu0 %v1066, 112
        %v1136 = vpop.permute.xlu0 %1135
        %1139 = vrot.lane.b32.xlu0 %v1063, 104
        %v1140 = vpop.permute.xlu0 %1139
        %1141 = vrot.lane.b32.xlu0 %v1066, 104
        %v1142 = vpop.permute.xlu0 %1141
        %v1145 = vpack.c.bf16 %v1063, %v1063
        %v1146 = vpack.c.bf16 %v1066, %v1066
        %v1147 = vpack.c.bf16 %v1128, %v1128
        %v1148 = vpack.c.bf16 %v1130, %v1130
        %v1149 = vpack.c.bf16 %v1134, %v1134
        %v1150 = vpack.c.bf16 %v1136, %v1136
        %v1151 = vpack.c.bf16 %v1140, %v1140
        %v1152 = vpack.c.bf16 %v1142, %v1142
        %vm1153 = vcmask 64512
        %v1155 = vsel %vm1153, %v1089, 0
        %v1158 = vsel %vm1153, %v1117, 0
        %1160 = vmatprep.subr.bf16.mxu0 0
        %1161 = vmatpush1.bf16.xpose.msra.mxu0 %v1158
        %1162 = vmatprep.subr.bf16.mxu0 0
        %1163 = vmatpush1.bf16.xpose.msra.mxu0 0
        %1164 = vmatprep.subr.bf16.mxu0 0
        %1165 = vmatpush1.bf16.xpose.msra.mxu0 0
        %1166 = vmatprep.subr.bf16.mxu0 0
        %1167 = vmatpush1.bf16.xpose.msra.mxu0 0
        %1168 = vmatprep.subr.bf16.mxu0 0
        %1169 = vmatpush1.bf16.xpose.msra.mxu0 0
        %1170 = vmatprep.subr.bf16.mxu0 0
        %1171 = vmatpush1.bf16.xpose.msra.mxu0 0
        %1172 = vmatprep.subr.bf16.mxu0 0
        %1173 = vmatpush1.bf16.xpose.msra.mxu0 0
        %1174 = vmatprep.subr.bf16.mxu0 0
        %1175 = vmatpush1.bf16.xpose.msra.mxu0 0
        %1176 = vmatprep.subr.bf16.mxu0 0
        %1177 = vmatpush1.bf16.xpose.msra.mxu0 0
        %1178 = vmatprep.subr.bf16.mxu0 0
        %1179 = vmatpush1.bf16.xpose.msra.mxu0 0
        %1180 = vmatprep.subr.bf16.mxu0 0
        %1181 = vmatpush1.bf16.xpose.msra.mxu0 0
        %1182 = vmatprep.subr.bf16.mxu0 0
        %1183 = vmatpush1.bf16.xpose.msra.mxu0 0
        %1184 = vmatprep.subr.bf16.mxu0 0
        %1185 = vmatpush1.bf16.xpose.msra.mxu0 0
        %1186 = vmatprep.subr.bf16.mxu0 0
        %1187 = vmatpush1.bf16.xpose.msra.mxu0 0
        %1188 = vmatprep.subr.bf16.mxu0 0
        %1189 = vmatpush1.bf16.xpose.msra.mxu0 0
        %1190 = vmatprep.subr.bf16.mxu0 0
        %1191 = vmatpush1.bf16.xpose.msra.mxu0 0
        %1192 = vmatprep.mubr.bf16.mxu0 0
        %1193 = vmatmul.mubr.bf16.gmra.mrb[0].mxu0 %v1155
        %v1194 = vpop.f32.mrb[0].mxu0
        %v1195 = vadd.f32 0.0, %v1194
        %v1196 = vpop.f32.mrb[0].mxu0
        %v1197 = vpop.f32.mrb[0].mxu0
        %v1198 = vpop.f32.mrb[0].mxu0
        %1199 = vdwg.mxu0
        %v1201 = vsel %vm1153, %v1090, 0
        %v1204 = vsel %vm1153, %v1118, 0
        %1206 = vmatprep.subr.bf16.mxu0 0
        %1207 = vmatpush1.bf16.xpose.msra.mxu0 %v1204
        %1208 = vmatprep.subr.bf16.mxu0 0
        %1209 = vmatpush1.bf16.xpose.msra.mxu0 0
        %1210 = vmatprep.subr.bf16.mxu0 0
        %1211 = vmatpush1.bf16.xpose.msra.mxu0 0
        %1212 = vmatprep.subr.bf16.mxu0 0
        %1213 = vmatpush1.bf16.xpose.msra.mxu0 0
        %1214 = vmatprep.subr.bf16.mxu0 0
        %1215 = vmatpush1.bf16.xpose.msra.mxu0 0
        %1216 = vmatprep.subr.bf16.mxu0 0
        %1217 = vmatpush1.bf16.xpose.msra.mxu0 0
        %1218 = vmatprep.subr.bf16.mxu0 0
        %1219 = vmatpush1.bf16.xpose.msra.mxu0 0
        %1220 = vmatprep.subr.bf16.mxu0 0
        %1221 = vmatpush1.bf16.xpose.msra.mxu0 0
        %1222 = vmatprep.subr.bf16.mxu0 0
        %1223 = vmatpush1.bf16.xpose.msra.mxu0 0
        %1224 = vmatprep.subr.bf16.mxu0 0
        %1225 = vmatpush1.bf16.xpose.msra.mxu0 0
        %1226 = vmatprep.subr.bf16.mxu0 0
        %1227 = vmatpush1.bf16.xpose.msra.mxu0 0
        %1228 = vmatprep.subr.bf16.mxu0 0
        %1229 = vmatpush1.bf16.xpose.msra.mxu0 0
        %1230 = vmatprep.subr.bf16.mxu0 0
        %1231 = vmatpush1.bf16.xpose.msra.mxu0 0
        %1232 = vmatprep.subr.bf16.mxu0 0
        %1233 = vmatpush1.bf16.xpose.msra.mxu0 0
        %1234 = vmatprep.subr.bf16.mxu0 0
        %1235 = vmatpush1.bf16.xpose.msra.mxu0 0
        %1236 = vmatprep.subr.bf16.mxu0 0
        %1237 = vmatpush1.bf16.xpose.msra.mxu0 0
        %1238 = vmatprep.mubr.bf16.mxu0 0
        %1239 = vmatmul.mubr.bf16.gmra.mrb[0].mxu0 %v1201
        %v1240 = vpop.f32.mrb[0].mxu0
        %v1241 = vadd.f32 0.0, %v1240
        %v1242 = vpop.f32.mrb[0].mxu0
        %v1243 = vpop.f32.mrb[0].mxu0
        %v1244 = vpop.f32.mrb[0].mxu0
        %1245 = vdwg.mxu0
        %v1247 = vsel %vm1153, %v1091, 0
        %v1250 = vsel %vm1153, %v1119, 0
        %1252 = vmatprep.subr.bf16.mxu0 0
        %1253 = vmatpush1.bf16.xpose.msra.mxu0 %v1250
        %1254 = vmatprep.subr.bf16.mxu0 0
        %1255 = vmatpush1.bf16.xpose.msra.mxu0 0
        %1256 = vmatprep.subr.bf16.mxu0 0
        %1257 = vmatpush1.bf16.xpose.msra.mxu0 0
        %1258 = vmatprep.subr.bf16.mxu0 0
        %1259 = vmatpush1.bf16.xpose.msra.mxu0 0
        %1260 = vmatprep.subr.bf16.mxu0 0
        %1261 = vmatpush1.bf16.xpose.msra.mxu0 0
        %1262 = vmatprep.subr.bf16.mxu0 0
        %1263 = vmatpush1.bf16.xpose.msra.mxu0 0
        %1264 = vmatprep.subr.bf16.mxu0 0
        %1265 = vmatpush1.bf16.xpose.msra.mxu0 0
        %1266 = vmatprep.subr.bf16.mxu0 0
        %1267 = vmatpush1.bf16.xpose.msra.mxu0 0
        %1268 = vmatprep.subr.bf16.mxu0 0
        %1269 = vmatpush1.bf16.xpose.msra.mxu0 0
        %1270 = vmatprep.subr.bf16.mxu0 0
        %1271 = vmatpush1.bf16.xpose.msra.mxu0 0
        %1272 = vmatprep.subr.bf16.mxu0 0
        %1273 = vmatpush1.bf16.xpose.msra.mxu0 0
        %1274 = vmatprep.subr.bf16.mxu0 0
        %1275 = vmatpush1.bf16.xpose.msra.mxu0 0
        %1276 = vmatprep.subr.bf16.mxu0 0
        %1277 = vmatpush1.bf16.xpose.msra.mxu0 0
        %1278 = vmatprep.subr.bf16.mxu0 0
        %1279 = vmatpush1.bf16.xpose.msra.mxu0 0
        %1280 = vmatprep.subr.bf16.mxu0 0
        %1281 = vmatpush1.bf16.xpose.msra.mxu0 0
        %1282 = vmatprep.subr.bf16.mxu0 0
        %1283 = vmatpush1.bf16.xpose.msra.mxu0 0
        %1284 = vmatprep.mubr.bf16.mxu0 0
        %1285 = vmatmul.mubr.bf16.gmra.mrb[0].mxu0 %v1247
        %v1286 = vpop.f32.mrb[0].mxu0
        %v1287 = vadd.f32 0.0, %v1286
        %v1288 = vpop.f32.mrb[0].mxu0
        %v1289 = vpop.f32.mrb[0].mxu0
        %v1290 = vpop.f32.mrb[0].mxu0
        %1291 = vdwg.mxu0
        %v1293 = vsel %vm1153, %v1092, 0
        %v1296 = vsel %vm1153, %v1120, 0
        %1298 = vmatprep.subr.bf16.mxu0 0
        %1299 = vmatpush1.bf16.xpose.msra.mxu0 %v1296
        %1300 = vmatprep.subr.bf16.mxu0 0
        %1301 = vmatpush1.bf16.xpose.msra.mxu0 0
        %1302 = vmatprep.subr.bf16.mxu0 0
        %1303 = vmatpush1.bf16.xpose.msra.mxu0 0
        %1304 = vmatprep.subr.bf16.mxu0 0
        %1305 = vmatpush1.bf16.xpose.msra.mxu0 0
        %1306 = vmatprep.subr.bf16.mxu0 0
        %1307 = vmatpush1.bf16.xpose.msra.mxu0 0
        %1308 = vmatprep.subr.bf16.mxu0 0
        %1309 = vmatpush1.bf16.xpose.msra.mxu0 0
        %1310 = vmatprep.subr.bf16.mxu0 0
        %1311 = vmatpush1.bf16.xpose.msra.mxu0 0
        %1312 = vmatprep.subr.bf16.mxu0 0
        %1313 = vmatpush1.bf16.xpose.msra.mxu0 0
        %1314 = vmatprep.subr.bf16.mxu0 0
        %1315 = vmatpush1.bf16.xpose.msra.mxu0 0
        %1316 = vmatprep.subr.bf16.mxu0 0
        %1317 = vmatpush1.bf16.xpose.msra.mxu0 0
        %1318 = vmatprep.subr.bf16.mxu0 0
        %1319 = vmatpush1.bf16.xpose.msra.mxu0 0
        %1320 = vmatprep.subr.bf16.mxu0 0
        %1321 = vmatpush1.bf16.xpose.msra.mxu0 0
        %1322 = vmatprep.subr.bf16.mxu0 0
        %1323 = vmatpush1.bf16.xpose.msra.mxu0 0
        %1324 = vmatprep.subr.bf16.mxu0 0
        %1325 = vmatpush1.bf16.xpose.msra.mxu0 0
        %1326 = vmatprep.subr.bf16.mxu0 0
        %1327 = vmatpush1.bf16.xpose.msra.mxu0 0
        %1328 = vmatprep.subr.bf16.mxu0 0
        %1329 = vmatpush1.bf16.xpose.msra.mxu0 0
        %1330 = vmatprep.mubr.bf16.mxu0 0
        %1331 = vmatmul.mubr.bf16.gmra.mrb[0].mxu0 %v1293
        %v1332 = vpop.f32.mrb[0].mxu0
        %v1333 = vadd.f32 0.0, %v1332
        %v1334 = vpop.f32.mrb[0].mxu0
        %v1335 = vpop.f32.mrb[0].mxu0
        %v1336 = vpop.f32.mrb[0].mxu0
        %1337 = vdwg.mxu0
        %v1339 = vsel %vm1153, %v1093, 0
        %v1342 = vsel %vm1153, %v1121, 0
        %1344 = vmatprep.subr.bf16.mxu0 0
        %1345 = vmatpush1.bf16.xpose.msra.mxu0 %v1342
        %1346 = vmatprep.subr.bf16.mxu0 0
        %1347 = vmatpush1.bf16.xpose.msra.mxu0 0
        %1348 = vmatprep.subr.bf16.mxu0 0
        %1349 = vmatpush1.bf16.xpose.msra.mxu0 0
        %1350 = vmatprep.subr.bf16.mxu0 0
        %1351 = vmatpush1.bf16.xpose.msra.mxu0 0
        %1352 = vmatprep.subr.bf16.mxu0 0
        %1353 = vmatpush1.bf16.xpose.msra.mxu0 0
        %1354 = vmatprep.subr.bf16.mxu0 0
        %1355 = vmatpush1.bf16.xpose.msra.mxu0 0
        %1356 = vmatprep.subr.bf16.mxu0 0
        %1357 = vmatpush1.bf16.xpose.msra.mxu0 0
        %1358 = vmatprep.subr.bf16.mxu0 0
        %1359 = vmatpush1.bf16.xpose.msra.mxu0 0
        %1360 = vmatprep.subr.bf16.mxu0 0
        %1361 = vmatpush1.bf16.xpose.msra.mxu0 0
        %1362 = vmatprep.subr.bf16.mxu0 0
        %1363 = vmatpush1.bf16.xpose.msra.mxu0 0
        %1364 = vmatprep.subr.bf16.mxu0 0
        %1365 = vmatpush1.bf16.xpose.msra.mxu0 0
        %1366 = vmatprep.subr.bf16.mxu0 0
        %1367 = vmatpush1.bf16.xpose.msra.mxu0 0
        %1368 = vmatprep.subr.bf16.mxu0 0
        %1369 = vmatpush1.bf16.xpose.msra.mxu0 0
        %1370 = vmatprep.subr.bf16.mxu0 0
        %1371 = vmatpush1.bf16.xpose.msra.mxu0 0
        %1372 = vmatprep.subr.bf16.mxu0 0
        %1373 = vmatpush1.bf16.xpose.msra.mxu0 0
        %1374 = vmatprep.subr.bf16.mxu0 0
        %1375 = vmatpush1.bf16.xpose.msra.mxu0 0
        %1376 = vmatprep.mubr.bf16.mxu0 0
        %1377 = vmatmul.mubr.bf16.gmra.mrb[0].mxu0 %v1339
        %v1378 = vpop.f32.mrb[0].mxu0
        %v1379 = vadd.f32 0.0, %v1378
        %v1380 = vpop.f32.mrb[0].mxu0
        %v1381 = vpop.f32.mrb[0].mxu0
        %v1382 = vpop.f32.mrb[0].mxu0
        %1383 = vdwg.mxu0
        %v1385 = vsel %vm1153, %v1094, 0
        %v1388 = vsel %vm1153, %v1122, 0
        %1390 = vmatprep.subr.bf16.mxu0 0
        %1391 = vmatpush1.bf16.xpose.msra.mxu0 %v1388
        %1392 = vmatprep.subr.bf16.mxu0 0
        %1393 = vmatpush1.bf16.xpose.msra.mxu0 0
        %1394 = vmatprep.subr.bf16.mxu0 0
        %1395 = vmatpush1.bf16.xpose.msra.mxu0 0
        %1396 = vmatprep.subr.bf16.mxu0 0
        %1397 = vmatpush1.bf16.xpose.msra.mxu0 0
        %1398 = vmatprep.subr.bf16.mxu0 0
        %1399 = vmatpush1.bf16.xpose.msra.mxu0 0
        %1400 = vmatprep.subr.bf16.mxu0 0
        %1401 = vmatpush1.bf16.xpose.msra.mxu0 0
        %1402 = vmatprep.subr.bf16.mxu0 0
        %1403 = vmatpush1.bf16.xpose.msra.mxu0 0
        %1404 = vmatprep.subr.bf16.mxu0 0
        %1405 = vmatpush1.bf16.xpose.msra.mxu0 0
        %1406 = vmatprep.subr.bf16.mxu0 0
        %1407 = vmatpush1.bf16.xpose.msra.mxu0 0
        %1408 = vmatprep.subr.bf16.mxu0 0
        %1409 = vmatpush1.bf16.xpose.msra.mxu0 0
        %1410 = vmatprep.subr.bf16.mxu0 0
        %1411 = vmatpush1.bf16.xpose.msra.mxu0 0
        %1412 = vmatprep.subr.bf16.mxu0 0
        %1413 = vmatpush1.bf16.xpose.msra.mxu0 0
        %1414 = vmatprep.subr.bf16.mxu0 0
        %1415 = vmatpush1.bf16.xpose.msra.mxu0 0
        %1416 = vmatprep.subr.bf16.mxu0 0
        %1417 = vmatpush1.bf16.xpose.msra.mxu0 0
        %1418 = vmatprep.subr.bf16.mxu0 0
        %1419 = vmatpush1.bf16.xpose.msra.mxu0 0
        %1420 = vmatprep.subr.bf16.mxu0 0
        %1421 = vmatpush1.bf16.xpose.msra.mxu0 0
        %1422 = vmatprep.mubr.bf16.mxu0 0
        %1423 = vmatmul.mubr.bf16.gmra.mrb[0].mxu0 %v1385
        %v1424 = vpop.f32.mrb[0].mxu0
        %v1425 = vadd.f32 0.0, %v1424
        %v1426 = vpop.f32.mrb[0].mxu0
        %v1427 = vpop.f32.mrb[0].mxu0
        %v1428 = vpop.f32.mrb[0].mxu0
        %1429 = vdwg.mxu0
        %v1431 = vsel %vm1153, %v1095, 0
        %v1434 = vsel %vm1153, %v1123, 0
        %1436 = vmatprep.subr.bf16.mxu0 0
        %1437 = vmatpush1.bf16.xpose.msra.mxu0 %v1434
        %1438 = vmatprep.subr.bf16.mxu0 0
        %1439 = vmatpush1.bf16.xpose.msra.mxu0 0
        %1440 = vmatprep.subr.bf16.mxu0 0
        %1441 = vmatpush1.bf16.xpose.msra.mxu0 0
        %1442 = vmatprep.subr.bf16.mxu0 0
        %1443 = vmatpush1.bf16.xpose.msra.mxu0 0
        %1444 = vmatprep.subr.bf16.mxu0 0
        %1445 = vmatpush1.bf16.xpose.msra.mxu0 0
        %1446 = vmatprep.subr.bf16.mxu0 0
        %1447 = vmatpush1.bf16.xpose.msra.mxu0 0
        %1448 = vmatprep.subr.bf16.mxu0 0
        %1449 = vmatpush1.bf16.xpose.msra.mxu0 0
        %1450 = vmatprep.subr.bf16.mxu0 0
        %1451 = vmatpush1.bf16.xpose.msra.mxu0 0
        %1452 = vmatprep.subr.bf16.mxu0 0
        %1453 = vmatpush1.bf16.xpose.msra.mxu0 0
        %1454 = vmatprep.subr.bf16.mxu0 0
        %1455 = vmatpush1.bf16.xpose.msra.mxu0 0
        %1456 = vmatprep.subr.bf16.mxu0 0
        %1457 = vmatpush1.bf16.xpose.msra.mxu0 0
        %1458 = vmatprep.subr.bf16.mxu0 0
        %1459 = vmatpush1.bf16.xpose.msra.mxu0 0
        %1460 = vmatprep.subr.bf16.mxu0 0
        %1461 = vmatpush1.bf16.xpose.msra.mxu0 0
        %1462 = vmatprep.subr.bf16.mxu0 0
        %1463 = vmatpush1.bf16.xpose.msra.mxu0 0
        %1464 = vmatprep.subr.bf16.mxu0 0
        %1465 = vmatpush1.bf16.xpose.msra.mxu0 0
        %1466 = vmatprep.subr.bf16.mxu0 0
        %1467 = vmatpush1.bf16.xpose.msra.mxu0 0
        %1468 = vmatprep.mubr.bf16.mxu0 0
        %1469 = vmatmul.mubr.bf16.gmra.mrb[0].mxu0 %v1431
        %v1470 = vpop.f32.mrb[0].mxu0
        %v1471 = vadd.f32 0.0, %v1470
        %v1472 = vpop.f32.mrb[0].mxu0
        %v1473 = vpop.f32.mrb[0].mxu0
        %v1474 = vpop.f32.mrb[0].mxu0
        %1475 = vdwg.mxu0
        %v1477 = vsel %vm1153, %v1096, 0
        %v1480 = vsel %vm1153, %v1124, 0
        %1482 = vmatprep.subr.bf16.mxu0 0
        %1483 = vmatpush1.bf16.xpose.msra.mxu0 %v1480
        %1484 = vmatprep.subr.bf16.mxu0 0
        %1485 = vmatpush1.bf16.xpose.msra.mxu0 0
        %1486 = vmatprep.subr.bf16.mxu0 0
        %1487 = vmatpush1.bf16.xpose.msra.mxu0 0
        %1488 = vmatprep.subr.bf16.mxu0 0
        %1489 = vmatpush1.bf16.xpose.msra.mxu0 0
        %1490 = vmatprep.subr.bf16.mxu0 0
        %1491 = vmatpush1.bf16.xpose.msra.mxu0 0
        %1492 = vmatprep.subr.bf16.mxu0 0
        %1493 = vmatpush1.bf16.xpose.msra.mxu0 0
        %1494 = vmatprep.subr.bf16.mxu0 0
        %1495 = vmatpush1.bf16.xpose.msra.mxu0 0
        %1496 = vmatprep.subr.bf16.mxu0 0
        %1497 = vmatpush1.bf16.xpose.msra.mxu0 0
        %1498 = vmatprep.subr.bf16.mxu0 0
        %1499 = vmatpush1.bf16.xpose.msra.mxu0 0
        %1500 = vmatprep.subr.bf16.mxu0 0
        %1501 = vmatpush1.bf16.xpose.msra.mxu0 0
        %1502 = vmatprep.subr.bf16.mxu0 0
        %1503 = vmatpush1.bf16.xpose.msra.mxu0 0
        %1504 = vmatprep.subr.bf16.mxu0 0
        %1505 = vmatpush1.bf16.xpose.msra.mxu0 0
        %1506 = vmatprep.subr.bf16.mxu0 0
        %1507 = vmatpush1.bf16.xpose.msra.mxu0 0
        %1508 = vmatprep.subr.bf16.mxu0 0
        %1509 = vmatpush1.bf16.xpose.msra.mxu0 0
        %1510 = vmatprep.subr.bf16.mxu0 0
        %1511 = vmatpush1.bf16.xpose.msra.mxu0 0
        %1512 = vmatprep.subr.bf16.mxu0 0
        %1513 = vmatpush1.bf16.xpose.msra.mxu0 0
        %1514 = vmatprep.mubr.bf16.mxu0 0
        %1515 = vmatmul.mubr.bf16.gmra.mrb[0].mxu0 %v1477
        %v1516 = vpop.f32.mrb[0].mxu0
        %v1517 = vadd.f32 0.0, %v1516
        %v1518 = vpop.f32.mrb[0].mxu0
        %v1519 = vpop.f32.mrb[0].mxu0
        %v1520 = vpop.f32.mrb[0].mxu0
        %1521 = vdwg.mxu0
        %v1522 = vsel %vm1153, %v1195, -inf
        %1523 = vmax.xlane.f32.xlu0 %v1522
        %v1524 = vpop.xlane.xlu0 %1523
        %v1525 = vsel %vm1153, %v1241, -inf
        %1526 = vmax.xlane.f32.xlu0 %v1525
        %v1527 = vpop.xlane.xlu0 %1526
        %v1528 = vsel %vm1153, %v1287, -inf
        %1529 = vmax.xlane.f32.xlu0 %v1528
        %v1530 = vpop.xlane.xlu0 %1529
        %v1531 = vsel %vm1153, %v1333, -inf
        %1532 = vmax.xlane.f32.xlu0 %v1531
        %v1533 = vpop.xlane.xlu0 %1532
        %v1534 = vsel %vm1153, %v1379, -inf
        %1535 = vmax.xlane.f32.xlu0 %v1534
        %v1536 = vpop.xlane.xlu0 %1535
        %v1537 = vsel %vm1153, %v1425, -inf
        %1538 = vmax.xlane.f32.xlu0 %v1537
        %v1539 = vpop.xlane.xlu0 %1538
        %v1540 = vsel %vm1153, %v1471, -inf
        %1541 = vmax.xlane.f32.xlu0 %v1540
        %v1542 = vpop.xlane.xlu0 %1541
        %v1543 = vsel %vm1153, %v1517, -inf
        %1544 = vmax.xlane.f32.xlu0 %v1543
        %v1545 = vpop.xlane.xlu0 %1544
        %v1546 = vsub.f32 %v1195, %v1524
        %v1547 = vsub.f32 %v1241, %v1527
        %v1548 = vsub.f32 %v1287, %v1530
        %v1549 = vsub.f32 %v1333, %v1533
        %v1550 = vsub.f32 %v1379, %v1536
        %v1551 = vsub.f32 %v1425, %v1539
        %v1552 = vsub.f32 %v1471, %v1542
        %v1553 = vsub.f32 %v1517, %v1545
        %v1554 = vmul.f32 %v1546, 1.442695
        %v1555 = vpow.pop %v1554
        %v1556 = vmul.f32 %v1547, 1.442695
        %v1557 = vpow.pop %v1556
        %v1558 = vmul.f32 %v1548, 1.442695
        %v1559 = vpow.pop %v1558
        %v1560 = vmul.f32 %v1549, 1.442695
        %v1561 = vpow.pop %v1560
        %v1562 = vmul.f32 %v1550, 1.442695
        %v1563 = vpow.pop %v1562
        %v1564 = vmul.f32 %v1551, 1.442695
        %v1565 = vpow.pop %v1564
        %v1566 = vmul.f32 %v1552, 1.442695
        %v1567 = vpow.pop %v1566
        %v1568 = vmul.f32 %v1553, 1.442695
        %v1569 = vpow.pop %v1568
        %v1570 = vsel %vm1153, %v1555, 0.0
        %1571 = vadd.xlane.f32.xlu0 %v1570
        %v1572 = vpop.xlane.xlu0 %1571
        %v1573 = vsel %vm1153, %v1557, 0.0
        %1574 = vadd.xlane.f32.xlu0 %v1573
        %v1575 = vpop.xlane.xlu0 %1574
        %v1576 = vsel %vm1153, %v1559, 0.0
        %1577 = vadd.xlane.f32.xlu0 %v1576
        %v1578 = vpop.xlane.xlu0 %1577
        %v1579 = vsel %vm1153, %v1561, 0.0
        %1580 = vadd.xlane.f32.xlu0 %v1579
        %v1581 = vpop.xlane.xlu0 %1580
        %v1582 = vsel %vm1153, %v1563, 0.0
        %1583 = vadd.xlane.f32.xlu0 %v1582
        %v1584 = vpop.xlane.xlu0 %1583
        %v1585 = vsel %vm1153, %v1565, 0.0
        %1586 = vadd.xlane.f32.xlu0 %v1585
        %v1587 = vpop.xlane.xlu0 %1586
        %v1588 = vsel %vm1153, %v1567, 0.0
        %1589 = vadd.xlane.f32.xlu0 %v1588
        %v1590 = vpop.xlane.xlu0 %1589
        %v1591 = vsel %vm1153, %v1569, 0.0
        %1592 = vadd.xlane.f32.xlu0 %v1591
        %v1593 = vpop.xlane.xlu0 %1592
        %v1594 = vrcp.pop %v1572
        %v1595 = vrcp.pop %v1575
        %v1596 = vrcp.pop %v1578
        %v1597 = vrcp.pop %v1581
        %v1598 = vrcp.pop %v1584
        %v1599 = vrcp.pop %v1587
        %v1600 = vrcp.pop %v1590
        %v1601 = vrcp.pop %v1593
        %v1602 = vmul.f32 %v1555, %v1594
        %v1603 = vmul.f32 %v1557, %v1595
        %v1604 = vmul.f32 %v1559, %v1596
        %v1605 = vmul.f32 %v1561, %v1597
        %v1606 = vmul.f32 %v1563, %v1598
        %v1607 = vmul.f32 %v1565, %v1599
        %v1608 = vmul.f32 %v1567, %v1600
        %v1609 = vmul.f32 %v1569, %v1601
        %v1610 = vpack.c.bf16 %v1602, %v1602
        %v1611 = vpack.c.bf16 %v1603, %v1603
        %v1612 = vpack.c.bf16 %v1604, %v1604
        %v1613 = vpack.c.bf16 %v1605, %v1605
        %v1614 = vpack.c.bf16 %v1606, %v1606
        %v1615 = vpack.c.bf16 %v1607, %v1607
        %v1616 = vpack.c.bf16 %v1608, %v1608
        %v1617 = vpack.c.bf16 %v1609, %v1609
        %v1619 = vsel %vm1153, %v1610, 0
        %vm1621 = vcmask 1043456
        %v1623 = vsel %vm1621, %v1145, 0
        %1625 = vmatprep.subr.bf16.mxu0 0
        %1626 = vmatpush1.bf16.msra.mxu0 %v1623
        %1627 = vmatprep.subr.bf16.mxu0 0
        %1628 = vmatpush1.bf16.msra.mxu0 0
        %1629 = vmatprep.subr.bf16.mxu0 0
        %1630 = vmatpush1.bf16.msra.mxu0 0
        %1631 = vmatprep.subr.bf16.mxu0 0
        %1632 = vmatpush1.bf16.msra.mxu0 0
        %1633 = vmatprep.subr.bf16.mxu0 0
        %1634 = vmatpush1.bf16.msra.mxu0 0
        %1635 = vmatprep.subr.bf16.mxu0 0
        %1636 = vmatpush1.bf16.msra.mxu0 0
        %1637 = vmatprep.subr.bf16.mxu0 0
        %1638 = vmatpush1.bf16.msra.mxu0 0
        %1639 = vmatprep.subr.bf16.mxu0 0
        %1640 = vmatpush1.bf16.msra.mxu0 0
        %1641 = vmatprep.subr.bf16.mxu0 0
        %1642 = vmatpush1.bf16.msra.mxu0 0
        %1643 = vmatprep.subr.bf16.mxu0 0
        %1644 = vmatpush1.bf16.msra.mxu0 0
        %1645 = vmatprep.subr.bf16.mxu0 0
        %1646 = vmatpush1.bf16.msra.mxu0 0
        %1647 = vmatprep.subr.bf16.mxu0 0
        %1648 = vmatpush1.bf16.msra.mxu0 0
        %1649 = vmatprep.subr.bf16.mxu0 0
        %1650 = vmatpush1.bf16.msra.mxu0 0
        %1651 = vmatprep.subr.bf16.mxu0 0
        %1652 = vmatpush1.bf16.msra.mxu0 0
        %1653 = vmatprep.subr.bf16.mxu0 0
        %1654 = vmatpush1.bf16.msra.mxu0 0
        %1655 = vmatprep.subr.bf16.mxu0 0
        %1656 = vmatpush1.bf16.msra.mxu0 0
        %1657 = vmatprep.mubr.bf16.mxu0 0
        %1658 = vmatmul.mubr.bf16.gmra.mrb[0].mxu0 %v1619
        %v1659 = vpop.f32.mrb[0].mxu0
        %v1660 = vadd.f32 0.0, %v1659
        %v1661 = vpop.f32.mrb[0].mxu0
        %v1662 = vpop.f32.mrb[0].mxu0
        %v1663 = vpop.f32.mrb[0].mxu0
        %1664 = vdwg.mxu0
        %v1666 = vsel %vm1153, %v1611, 0
        %v1669 = vsel %vm1621, %v1146, 0
        %1671 = vmatprep.subr.bf16.mxu0 0
        %1672 = vmatpush1.bf16.msra.mxu0 %v1669
        %1673 = vmatprep.subr.bf16.mxu0 0
        %1674 = vmatpush1.bf16.msra.mxu0 0
        %1675 = vmatprep.subr.bf16.mxu0 0
        %1676 = vmatpush1.bf16.msra.mxu0 0
        %1677 = vmatprep.subr.bf16.mxu0 0
        %1678 = vmatpush1.bf16.msra.mxu0 0
        %1679 = vmatprep.subr.bf16.mxu0 0
        %1680 = vmatpush1.bf16.msra.mxu0 0
        %1681 = vmatprep.subr.bf16.mxu0 0
        %1682 = vmatpush1.bf16.msra.mxu0 0
        %1683 = vmatprep.subr.bf16.mxu0 0
        %1684 = vmatpush1.bf16.msra.mxu0 0
        %1685 = vmatprep.subr.bf16.mxu0 0
        %1686 = vmatpush1.bf16.msra.mxu0 0
        %1687 = vmatprep.subr.bf16.mxu0 0
        %1688 = vmatpush1.bf16.msra.mxu0 0
        %1689 = vmatprep.subr.bf16.mxu0 0
        %1690 = vmatpush1.bf16.msra.mxu0 0
        %1691 = vmatprep.subr.bf16.mxu0 0
        %1692 = vmatpush1.bf16.msra.mxu0 0
        %1693 = vmatprep.subr.bf16.mxu0 0
        %1694 = vmatpush1.bf16.msra.mxu0 0
        %1695 = vmatprep.subr.bf16.mxu0 0
        %1696 = vmatpush1.bf16.msra.mxu0 0
        %1697 = vmatprep.subr.bf16.mxu0 0
        %1698 = vmatpush1.bf16.msra.mxu0 0
        %1699 = vmatprep.subr.bf16.mxu0 0
        %1700 = vmatpush1.bf16.msra.mxu0 0
        %1701 = vmatprep.subr.bf16.mxu0 0
        %1702 = vmatpush1.bf16.msra.mxu0 0
        %1703 = vmatprep.mubr.bf16.mxu0 0
        %1704 = vmatmul.mubr.bf16.gmra.mrb[0].mxu0 %v1666
        %v1705 = vpop.f32.mrb[0].mxu0
        %v1706 = vadd.f32 0.0, %v1705
        %v1707 = vpop.f32.mrb[0].mxu0
        %v1708 = vpop.f32.mrb[0].mxu0
        %v1709 = vpop.f32.mrb[0].mxu0
        %1710 = vdwg.mxu0
        %v1712 = vsel %vm1153, %v1612, 0
        %v1715 = vsel %vm1621, %v1147, 0
        %1717 = vmatprep.subr.bf16.mxu0 0
        %1718 = vmatpush1.bf16.msra.mxu0 %v1715
        %1719 = vmatprep.subr.bf16.mxu0 0
        %1720 = vmatpush1.bf16.msra.mxu0 0
        %1721 = vmatprep.subr.bf16.mxu0 0
        %1722 = vmatpush1.bf16.msra.mxu0 0
        %1723 = vmatprep.subr.bf16.mxu0 0
        %1724 = vmatpush1.bf16.msra.mxu0 0
        %1725 = vmatprep.subr.bf16.mxu0 0
        %1726 = vmatpush1.bf16.msra.mxu0 0
        %1727 = vmatprep.subr.bf16.mxu0 0
        %1728 = vmatpush1.bf16.msra.mxu0 0
        %1729 = vmatprep.subr.bf16.mxu0 0
        %1730 = vmatpush1.bf16.msra.mxu0 0
        %1731 = vmatprep.subr.bf16.mxu0 0
        %1732 = vmatpush1.bf16.msra.mxu0 0
        %1733 = vmatprep.subr.bf16.mxu0 0
        %1734 = vmatpush1.bf16.msra.mxu0 0
        %1735 = vmatprep.subr.bf16.mxu0 0
        %1736 = vmatpush1.bf16.msra.mxu0 0
        %1737 = vmatprep.subr.bf16.mxu0 0
        %1738 = vmatpush1.bf16.msra.mxu0 0
        %1739 = vmatprep.subr.bf16.mxu0 0
        %1740 = vmatpush1.bf16.msra.mxu0 0
        %1741 = vmatprep.subr.bf16.mxu0 0
        %1742 = vmatpush1.bf16.msra.mxu0 0
        %1743 = vmatprep.subr.bf16.mxu0 0
        %1744 = vmatpush1.bf16.msra.mxu0 0
        %1745 = vmatprep.subr.bf16.mxu0 0
        %1746 = vmatpush1.bf16.msra.mxu0 0
        %1747 = vmatprep.subr.bf16.mxu0 0
        %1748 = vmatpush1.bf16.msra.mxu0 0
        %1749 = vmatprep.mubr.bf16.mxu0 0
        %1750 = vmatmul.mubr.bf16.gmra.mrb[0].mxu0 %v1712
        %v1751 = vpop.f32.mrb[0].mxu0
        %v1752 = vadd.f32 0.0, %v1751
        %v1753 = vpop.f32.mrb[0].mxu0
        %v1754 = vpop.f32.mrb[0].mxu0
        %v1755 = vpop.f32.mrb[0].mxu0
        %1756 = vdwg.mxu0
        %v1758 = vsel %vm1153, %v1613, 0
        %v1761 = vsel %vm1621, %v1148, 0
        %1763 = vmatprep.subr.bf16.mxu0 0
        %1764 = vmatpush1.bf16.msra.mxu0 %v1761
        %1765 = vmatprep.subr.bf16.mxu0 0
        %1766 = vmatpush1.bf16.msra.mxu0 0
        %1767 = vmatprep.subr.bf16.mxu0 0
        %1768 = vmatpush1.bf16.msra.mxu0 0
        %1769 = vmatprep.subr.bf16.mxu0 0
        %1770 = vmatpush1.bf16.msra.mxu0 0
        %1771 = vmatprep.subr.bf16.mxu0 0
        %1772 = vmatpush1.bf16.msra.mxu0 0
        %1773 = vmatprep.subr.bf16.mxu0 0
        %1774 = vmatpush1.bf16.msra.mxu0 0
        %1775 = vmatprep.subr.bf16.mxu0 0
        %1776 = vmatpush1.bf16.msra.mxu0 0
        %1777 = vmatprep.subr.bf16.mxu0 0
        %1778 = vmatpush1.bf16.msra.mxu0 0
        %1779 = vmatprep.subr.bf16.mxu0 0
        %1780 = vmatpush1.bf16.msra.mxu0 0
        %1781 = vmatprep.subr.bf16.mxu0 0
        %1782 = vmatpush1.bf16.msra.mxu0 0
        %1783 = vmatprep.subr.bf16.mxu0 0
        %1784 = vmatpush1.bf16.msra.mxu0 0
        %1785 = vmatprep.subr.bf16.mxu0 0
        %1786 = vmatpush1.bf16.msra.mxu0 0
        %1787 = vmatprep.subr.bf16.mxu0 0
        %1788 = vmatpush1.bf16.msra.mxu0 0
        %1789 = vmatprep.subr.bf16.mxu0 0
        %1790 = vmatpush1.bf16.msra.mxu0 0
        %1791 = vmatprep.subr.bf16.mxu0 0
        %1792 = vmatpush1.bf16.msra.mxu0 0
        %1793 = vmatprep.subr.bf16.mxu0 0
        %1794 = vmatpush1.bf16.msra.mxu0 0
        %1795 = vmatprep.mubr.bf16.mxu0 0
        %1796 = vmatmul.mubr.bf16.gmra.mrb[0].mxu0 %v1758
        %v1797 = vpop.f32.mrb[0].mxu0
        %v1798 = vadd.f32 0.0, %v1797
        %v1799 = vpop.f32.mrb[0].mxu0
        %v1800 = vpop.f32.mrb[0].mxu0
        %v1801 = vpop.f32.mrb[0].mxu0
        %1802 = vdwg.mxu0
        %v1804 = vsel %vm1153, %v1614, 0
        %v1807 = vsel %vm1621, %v1149, 0
        %1809 = vmatprep.subr.bf16.mxu0 0
        %1810 = vmatpush1.bf16.msra.mxu0 %v1807
        %1811 = vmatprep.subr.bf16.mxu0 0
        %1812 = vmatpush1.bf16.msra.mxu0 0
        %1813 = vmatprep.subr.bf16.mxu0 0
        %1814 = vmatpush1.bf16.msra.mxu0 0
        %1815 = vmatprep.subr.bf16.mxu0 0
        %1816 = vmatpush1.bf16.msra.mxu0 0
        %1817 = vmatprep.subr.bf16.mxu0 0
        %1818 = vmatpush1.bf16.msra.mxu0 0
        %1819 = vmatprep.subr.bf16.mxu0 0
        %1820 = vmatpush1.bf16.msra.mxu0 0
        %1821 = vmatprep.subr.bf16.mxu0 0
        %1822 = vmatpush1.bf16.msra.mxu0 0
        %1823 = vmatprep.subr.bf16.mxu0 0
        %1824 = vmatpush1.bf16.msra.mxu0 0
        %1825 = vmatprep.subr.bf16.mxu0 0
        %1826 = vmatpush1.bf16.msra.mxu0 0
        %1827 = vmatprep.subr.bf16.mxu0 0
        %1828 = vmatpush1.bf16.msra.mxu0 0
        %1829 = vmatprep.subr.bf16.mxu0 0
        %1830 = vmatpush1.bf16.msra.mxu0 0
        %1831 = vmatprep.subr.bf16.mxu0 0
        %1832 = vmatpush1.bf16.msra.mxu0 0
        %1833 = vmatprep.subr.bf16.mxu0 0
        %1834 = vmatpush1.bf16.msra.mxu0 0
        %1835 = vmatprep.subr.bf16.mxu0 0
        %1836 = vmatpush1.bf16.msra.mxu0 0
        %1837 = vmatprep.subr.bf16.mxu0 0
        %1838 = vmatpush1.bf16.msra.mxu0 0
        %1839 = vmatprep.subr.bf16.mxu0 0
        %1840 = vmatpush1.bf16.msra.mxu0 0
        %1841 = vmatprep.mubr.bf16.mxu0 0
        %1842 = vmatmul.mubr.bf16.gmra.mrb[0].mxu0 %v1804
        %v1843 = vpop.f32.mrb[0].mxu0
        %v1844 = vadd.f32 0.0, %v1843
        %v1845 = vpop.f32.mrb[0].mxu0
        %v1846 = vpop.f32.mrb[0].mxu0
        %v1847 = vpop.f32.mrb[0].mxu0
        %1848 = vdwg.mxu0
        %v1850 = vsel %vm1153, %v1615, 0
        %v1853 = vsel %vm1621, %v1150, 0
        %1855 = vmatprep.subr.bf16.mxu0 0
        %1856 = vmatpush1.bf16.msra.mxu0 %v1853
        %1857 = vmatprep.subr.bf16.mxu0 0
        %1858 = vmatpush1.bf16.msra.mxu0 0
        %1859 = vmatprep.subr.bf16.mxu0 0
        %1860 = vmatpush1.bf16.msra.mxu0 0
        %1861 = vmatprep.subr.bf16.mxu0 0
        %1862 = vmatpush1.bf16.msra.mxu0 0
        %1863 = vmatprep.subr.bf16.mxu0 0
        %1864 = vmatpush1.bf16.msra.mxu0 0
        %1865 = vmatprep.subr.bf16.mxu0 0
        %1866 = vmatpush1.bf16.msra.mxu0 0
        %1867 = vmatprep.subr.bf16.mxu0 0
        %1868 = vmatpush1.bf16.msra.mxu0 0
        %1869 = vmatprep.subr.bf16.mxu0 0
        %1870 = vmatpush1.bf16.msra.mxu0 0
        %1871 = vmatprep.subr.bf16.mxu0 0
        %1872 = vmatpush1.bf16.msra.mxu0 0
        %1873 = vmatprep.subr.bf16.mxu0 0
        %1874 = vmatpush1.bf16.msra.mxu0 0
        %1875 = vmatprep.subr.bf16.mxu0 0
        %1876 = vmatpush1.bf16.msra.mxu0 0
        %1877 = vmatprep.subr.bf16.mxu0 0
        %1878 = vmatpush1.bf16.msra.mxu0 0
        %1879 = vmatprep.subr.bf16.mxu0 0
        %1880 = vmatpush1.bf16.msra.mxu0 0
        %1881 = vmatprep.subr.bf16.mxu0 0
        %1882 = vmatpush1.bf16.msra.mxu0 0
        %1883 = vmatprep.subr.bf16.mxu0 0
        %1884 = vmatpush1.bf16.msra.mxu0 0
        %1885 = vmatprep.subr.bf16.mxu0 0
        %1886 = vmatpush1.bf16.msra.mxu0 0
        %1887 = vmatprep.mubr.bf16.mxu0 0
        %1888 = vmatmul.mubr.bf16.gmra.mrb[0].mxu0 %v1850
        %v1889 = vpop.f32.mrb[0].mxu0
        %v1890 = vadd.f32 0.0, %v1889
        %v1891 = vpop.f32.mrb[0].mxu0
        %v1892 = vpop.f32.mrb[0].mxu0
        %v1893 = vpop.f32.mrb[0].mxu0
        %1894 = vdwg.mxu0
        %v1896 = vsel %vm1153, %v1616, 0
        %v1899 = vsel %vm1621, %v1151, 0
        %1901 = vmatprep.subr.bf16.mxu0 0
        %1902 = vmatpush1.bf16.msra.mxu0 %v1899
        %1903 = vmatprep.subr.bf16.mxu0 0
        %1904 = vmatpush1.bf16.msra.mxu0 0
        %1905 = vmatprep.subr.bf16.mxu0 0
        %1906 = vmatpush1.bf16.msra.mxu0 0
        %1907 = vmatprep.subr.bf16.mxu0 0
        %1908 = vmatpush1.bf16.msra.mxu0 0
        %1909 = vmatprep.subr.bf16.mxu0 0
        %1910 = vmatpush1.bf16.msra.mxu0 0
        %1911 = vmatprep.subr.bf16.mxu0 0
        %1912 = vmatpush1.bf16.msra.mxu0 0
        %1913 = vmatprep.subr.bf16.mxu0 0
        %1914 = vmatpush1.bf16.msra.mxu0 0
        %1915 = vmatprep.subr.bf16.mxu0 0
        %1916 = vmatpush1.bf16.msra.mxu0 0
        %1917 = vmatprep.subr.bf16.mxu0 0
        %1918 = vmatpush1.bf16.msra.mxu0 0
        %1919 = vmatprep.subr.bf16.mxu0 0
        %1920 = vmatpush1.bf16.msra.mxu0 0
        %1921 = vmatprep.subr.bf16.mxu0 0
        %1922 = vmatpush1.bf16.msra.mxu0 0
        %1923 = vmatprep.subr.bf16.mxu0 0
        %1924 = vmatpush1.bf16.msra.mxu0 0
        %1925 = vmatprep.subr.bf16.mxu0 0
        %1926 = vmatpush1.bf16.msra.mxu0 0
        %1927 = vmatprep.subr.bf16.mxu0 0
        %1928 = vmatpush1.bf16.msra.mxu0 0
        %1929 = vmatprep.subr.bf16.mxu0 0
        %1930 = vmatpush1.bf16.msra.mxu0 0
        %1931 = vmatprep.subr.bf16.mxu0 0
        %1932 = vmatpush1.bf16.msra.mxu0 0
        %1933 = vmatprep.mubr.bf16.mxu0 0
        %1934 = vmatmul.mubr.bf16.gmra.mrb[0].mxu0 %v1896
        %v1935 = vpop.f32.mrb[0].mxu0
        %v1936 = vadd.f32 0.0, %v1935
        %v1937 = vpop.f32.mrb[0].mxu0
        %v1938 = vpop.f32.mrb[0].mxu0
        %v1939 = vpop.f32.mrb[0].mxu0
        %1940 = vdwg.mxu0
        %v1942 = vsel %vm1153, %v1617, 0
        %v1945 = vsel %vm1621, %v1152, 0
        %1947 = vmatprep.subr.bf16.mxu0 0
        %1948 = vmatpush1.bf16.msra.mxu0 %v1945
        %1949 = vmatprep.subr.bf16.mxu0 0
        %1950 = vmatpush1.bf16.msra.mxu0 0
        %1951 = vmatprep.subr.bf16.mxu0 0
        %1952 = vmatpush1.bf16.msra.mxu0 0
        %1953 = vmatprep.subr.bf16.mxu0 0
        %1954 = vmatpush1.bf16.msra.mxu0 0
        %1955 = vmatprep.subr.bf16.mxu0 0
        %1956 = vmatpush1.bf16.msra.mxu0 0
        %1957 = vmatprep.subr.bf16.mxu0 0
        %1958 = vmatpush1.bf16.msra.mxu0 0
        %1959 = vmatprep.subr.bf16.mxu0 0
        %1960 = vmatpush1.bf16.msra.mxu0 0
        %1961 = vmatprep.subr.bf16.mxu0 0
        %1962 = vmatpush1.bf16.msra.mxu0 0
        %1963 = vmatprep.subr.bf16.mxu0 0
        %1964 = vmatpush1.bf16.msra.mxu0 0
        %1965 = vmatprep.subr.bf16.mxu0 0
        %1966 = vmatpush1.bf16.msra.mxu0 0
        %1967 = vmatprep.subr.bf16.mxu0 0
        %1968 = vmatpush1.bf16.msra.mxu0 0
        %1969 = vmatprep.subr.bf16.mxu0 0
        %1970 = vmatpush1.bf16.msra.mxu0 0
        %1971 = vmatprep.subr.bf16.mxu0 0
        %1972 = vmatpush1.bf16.msra.mxu0 0
        %1973 = vmatprep.subr.bf16.mxu0 0
        %1974 = vmatpush1.bf16.msra.mxu0 0
        %1975 = vmatprep.subr.bf16.mxu0 0
        %1976 = vmatpush1.bf16.msra.mxu0 0
        %1977 = vmatprep.subr.bf16.mxu0 0
        %1978 = vmatpush1.bf16.msra.mxu0 0
        %1979 = vmatprep.mubr.bf16.mxu0 0
        %1980 = vmatmul.mubr.bf16.gmra.mrb[0].mxu0 %v1942
        %v1981 = vpop.f32.mrb[0].mxu0
        %v1982 = vadd.f32 0.0, %v1981
        %v1983 = vpop.f32.mrb[0].mxu0
        %v1984 = vpop.f32.mrb[0].mxu0
        %v1985 = vpop.f32.mrb[0].mxu0
        %1986 = vdwg.mxu0
        %1989 = vrot.lane.b32.xlu0 %v1752, 8
        %v1990 = vpop.permute.xlu0 %1989
        %1991 = vrot.lane.b32.xlu0 %v1798, 8
        %v1992 = vpop.permute.xlu0 %1991
        %1997 = vrot.lane.b32.xlu0 %v1844, 16
        %v1998 = vpop.permute.xlu0 %1997
        %1999 = vrot.lane.b32.xlu0 %v1890, 16
        %v2000 = vpop.permute.xlu0 %1999
        %2005 = vrot.lane.b32.xlu0 %v1936, 24
        %v2006 = vpop.permute.xlu0 %2005
        %2007 = vrot.lane.b32.xlu0 %v1982, 24
        %v2008 = vpop.permute.xlu0 %2007
        %v2011 = vsel %vm1153, %v1660, %v1990
        %v2012 = vsel %vm1153, %v1706, %v1992
        %vm2013 = vcmask 130048
        %v2014 = vsel %vm2013, %v2011, %v1998
        %v2015 = vsel %vm2013, %v2012, %v2000
        %vm2016 = vcmask 195584
        %v2017 = vsel %vm2016, %v2014, %v2006
        %v2018 = vsel %vm2016, %v2015, %v2008
        %v2019 = vpack.c.bf16 %v2018, %v2017
        %v2024 = vunpack.c.l.b16 %v900
        %v2025 = vunpack.c.l.b16 %v901
        %v2026 = vunpack.c.l.b16 %v902
        %v2027 = vunpack.c.l.b16 %v903
        %v2028 = vpack.c.b16 %v2025, %v2024
        %v2029 = vpack.c.b16 %v2027, %v2026
        %v2033 = vsel %vm916, %v2019, 0
        %2035 = vmatprep.subr.bf16.mxu0 0
        %2036 = vmatpush1.bf16.msra.mxu0 %v2028
        %2037 = vmatprep.subr.bf16.mxu0 0
        %2038 = vmatpush1.bf16.msra.mxu0 %v2029
        %2039 = vmatprep.subr.bf16.mxu0 0
        %2040 = vmatpush1.bf16.msra.mxu0 0
        %2041 = vmatprep.subr.bf16.mxu0 0
        %2042 = vmatpush1.bf16.msra.mxu0 0
        %2043 = vmatprep.subr.bf16.mxu0 0
        %2044 = vmatpush1.bf16.msra.mxu0 0
        %2045 = vmatprep.subr.bf16.mxu0 0
        %2046 = vmatpush1.bf16.msra.mxu0 0
        %2047 = vmatprep.subr.bf16.mxu0 0
        %2048 = vmatpush1.bf16.msra.mxu0 0
        %2049 = vmatprep.subr.bf16.mxu0 0
        %2050 = vmatpush1.bf16.msra.mxu0 0
        %2051 = vmatprep.subr.bf16.mxu0 0
        %2052 = vmatpush1.bf16.msra.mxu0 0
        %2053 = vmatprep.subr.bf16.mxu0 0
        %2054 = vmatpush1.bf16.msra.mxu0 0
        %2055 = vmatprep.subr.bf16.mxu0 0
        %2056 = vmatpush1.bf16.msra.mxu0 0
        %2057 = vmatprep.subr.bf16.mxu0 0
        %2058 = vmatpush1.bf16.msra.mxu0 0
        %2059 = vmatprep.subr.bf16.mxu0 0
        %2060 = vmatpush1.bf16.msra.mxu0 0
        %2061 = vmatprep.subr.bf16.mxu0 0
        %2062 = vmatpush1.bf16.msra.mxu0 0
        %2063 = vmatprep.subr.bf16.mxu0 0
        %2064 = vmatpush1.bf16.msra.mxu0 0
        %2065 = vmatprep.subr.bf16.mxu0 0
        %2066 = vmatpush1.bf16.msra.mxu0 0
        %2067 = vmatprep.mubr.bf16.mxu0 0
        %2068 = vmatmul.mubr.bf16.gmra.mrb[0].mxu0 %v2033
        %v2069 = vpop.f32.mrb[0].mxu0
        %v2070 = vadd.f32 0.0, %v2069
        %v2071 = vpop.f32.mrb[0].mxu0
        %v2072 = vpop.f32.mrb[0].mxu0
        %v2073 = vadd.f32 0.0, %v2072
        %v2074 = vpop.f32.mrb[0].mxu0
        %2075 = vdwg.mxu0
        %v2076 = vadd.f32 %v885, %v2070
        %v2077 = vadd.f32 %v886, %v2073
        %v2078 = vsel %vm916, %v2076, 0.0
        %2079 = vadd.xlane.f32.xlu0 %v2078
        %v2080 = vpop.xlane.xlu0 %2079
        %v2081 = vsel %vm916, %v2077, 0.0
        %2082 = vadd.xlane.f32.xlu0 %v2081
        %v2083 = vpop.xlane.xlu0 %2082
        %v2084 = vrcp.pop 32.0
        %v2085 = vmul.f32 %v2080, %v2084
        %v2086 = vmul.f32 %v2083, %v2084
        %v2087 = vsub.f32 %v2076, %v2085
        %v2088 = vsub.f32 %v2077, %v2086
        %v2089 = vmul.f32 %v2087, %v2087
        %v2090 = vmul.f32 %v2088, %v2088
        %v2091 = vsel %vm916, %v2089, 0.0
        %2092 = vadd.xlane.f32.xlu0 %v2091
        %v2093 = vpop.xlane.xlu0 %2092
        %v2094 = vsel %vm916, %v2090, 0.0
        %2095 = vadd.xlane.f32.xlu0 %v2094
        %v2096 = vpop.xlane.xlu0 %2095
        %v2097 = vmul.f32 %v2093, %v2084
        %v2098 = vmul.f32 %v2096, %v2084
        %v2099 = vadd.f32 %v2097, 1e-05
        %v2100 = vadd.f32 %v2098, 1e-05
        %v2101 = vrsqrt.pop %v2099
        %v2102 = vrsqrt.pop %v2100
        %v2103 = vmul.f32 %v2087, %v2101
        %v2104 = vmul.f32 %v2088, %v2102
        %v2105 = vld [vmem:[%s762] sm:$0x1]
        %v2107 = vlaneseq
        %v2108 = vshrl.u32 %v2107, 7
        %v2109 = vsub.s32 0, %v2108
        %v2110 = vrot.slane %v2105, %v2109
        %v2112 = vmul.f32 %v2103, %v2110
        %v2113 = vmul.f32 %v2104, %v2110
        %v2114 = vld [vmem:[%s770] sm:$0x1]
        %v2116 = vlaneseq
        %v2117 = vshrl.u32 %v2116, 7
        %v2118 = vsub.s32 0, %v2117
        %v2119 = vrot.slane %v2114, %v2118
        %v2121 = vadd.f32 %v2112, %v2119
        %v2122 = vadd.f32 %v2113, %v2119
        %v2123 = vpack.c.bf16 %v2122, %v2121
        %v2124 = vld [vmem:[%s729] sm:$0xf]
        %v2125 = vld [vmem:[%s729 + $0x4] sm:$0xf]
        %v2126 = vld [vmem:[%s729 + $0x8] sm:$0xf]
        %v2127 = vld [vmem:[%s729 + $0xc] sm:$0xf]
        %v2128 = vld [vmem:[%s737] sm:$0x1]
        %v2130 = vlaneseq
        %v2131 = vshrl.u32 %v2130, 7
        %v2132 = vsub.s32 0, %v2131
        %v2133 = vrot.slane %v2128, %v2132
        %v2139 = vunpack.c.l.b16 %v2124
        %v2140 = vunpack.c.l.b16 %v2125
        %v2141 = vunpack.c.l.b16 %v2126
        %v2142 = vunpack.c.l.b16 %v2127
        %v2143 = vpack.c.b16 %v2140, %v2139
        %v2144 = vpack.c.b16 %v2142, %v2141
        %v2148 = vsel %vm916, %v2123, 0
        %2150 = vmatprep.subr.bf16.mxu0 0
        %2151 = vmatpush1.bf16.msra.mxu0 %v2143
        %2152 = vmatprep.subr.bf16.mxu0 0
        %2153 = vmatpush1.bf16.msra.mxu0 %v2144
        %2154 = vmatprep.subr.bf16.mxu0 0
        %2155 = vmatpush1.bf16.msra.mxu0 0
        %2156 = vmatprep.subr.bf16.mxu0 0
        %2157 = vmatpush1.bf16.msra.mxu0 0
        %2158 = vmatprep.subr.bf16.mxu0 0
        %2159 = vmatpush1.bf16.msra.mxu0 0
        %2160 = vmatprep.subr.bf16.mxu0 0
        %2161 = vmatpush1.bf16.msra.mxu0 0
        %2162 = vmatprep.subr.bf16.mxu0 0
        %2163 = vmatpush1.bf16.msra.mxu0 0
        %2164 = vmatprep.subr.bf16.mxu0 0
        %2165 = vmatpush1.bf16.msra.mxu0 0
        %2166 = vmatprep.subr.bf16.mxu0 0
        %2167 = vmatpush1.bf16.msra.mxu0 0
        %2168 = vmatprep.subr.bf16.mxu0 0
        %2169 = vmatpush1.bf16.msra.mxu0 0
        %2170 = vmatprep.subr.bf16.mxu0 0
        %2171 = vmatpush1.bf16.msra.mxu0 0
        %2172 = vmatprep.subr.bf16.mxu0 0
        %2173 = vmatpush1.bf16.msra.mxu0 0
        %2174 = vmatprep.subr.bf16.mxu0 0
        %2175 = vmatpush1.bf16.msra.mxu0 0
        %2176 = vmatprep.subr.bf16.mxu0 0
        %2177 = vmatpush1.bf16.msra.mxu0 0
        %2178 = vmatprep.subr.bf16.mxu0 0
        %2179 = vmatpush1.bf16.msra.mxu0 0
        %2180 = vmatprep.subr.bf16.mxu0 0
        %2181 = vmatpush1.bf16.msra.mxu0 0
        %2182 = vmatprep.mubr.bf16.mxu0 0
        %2183 = vmatmul.mubr.bf16.gmra.mrb[0].mxu0 %v2148
        %v2184 = vpop.f32.mrb[0].mxu0
        %v2185 = vadd.f32 %v2133, %v2184
        %v2186 = vpop.f32.mrb[0].mxu0
        %v2187 = vpop.f32.mrb[0].mxu0
        %v2188 = vadd.f32 %v2133, %v2187
        %v2189 = vpop.f32.mrb[0].mxu0
        %2190 = vdwg.mxu0
        %v2191 = vmax.f32 %v2185, 0.0
        %v2192 = vmax.f32 %v2188, 0.0
        %v2193 = vpack.c.bf16 %v2192, %v2191
        %v2194 = vld [vmem:[%s746] sm:$0xf]
        %v2195 = vld [vmem:[%s746 + $0x4] sm:$0xf]
        %v2196 = vld [vmem:[%s746 + $0x8] sm:$0xf]
        %v2197 = vld [vmem:[%s746 + $0xc] sm:$0xf]
        %v2198 = vld [vmem:[%s746 + $0x10] sm:$0xf]
        %v2199 = vld [vmem:[%s746 + $0x14] sm:$0xf]
        %v2200 = vld [vmem:[%s746 + $0x18] sm:$0xf]
        %v2201 = vld [vmem:[%s746 + $0x1c] sm:$0xf]
        %v2202 = vld [vmem:[%s754] sm:$0x1]
        %v2204 = vlaneseq
        %v2205 = vshrl.u32 %v2204, 7
        %v2206 = vsub.s32 0, %v2205
        %v2207 = vrot.slane %v2202, %v2206
        %v2217 = vunpack.c.l.b16 %v2194
        %v2218 = vunpack.c.l.b16 %v2195
        %v2219 = vunpack.c.l.b16 %v2196
        %v2220 = vunpack.c.l.b16 %v2197
        %v2221 = vunpack.c.l.b16 %v2198
        %v2222 = vunpack.c.l.b16 %v2199
        %v2223 = vunpack.c.l.b16 %v2200
        %v2224 = vunpack.c.l.b16 %v2201
        %v2225 = vpack.c.b16 %v2218, %v2217
        %v2226 = vpack.c.b16 %v2220, %v2219
        %v2227 = vpack.c.b16 %v2222, %v2221
        %v2228 = vpack.c.b16 %v2224, %v2223
        %vm2233 = vcmask 523264
        %v2235 = vsel %vm2233, %v2193, 0
        %2237 = vmatprep.subr.bf16.mxu0 0
        %2238 = vmatpush1.bf16.msra.mxu0 %v2225
        %2239 = vmatprep.subr.bf16.mxu0 0
        %2240 = vmatpush1.bf16.msra.mxu0 %v2226
        %2241 = vmatprep.subr.bf16.mxu0 0
        %2242 = vmatpush1.bf16.msra.mxu0 %v2227
        %2243 = vmatprep.subr.bf16.mxu0 0
        %2244 = vmatpush1.bf16.msra.mxu0 %v2228
        %2245 = vmatprep.subr.bf16.mxu0 0
        %2246 = vmatpush1.bf16.msra.mxu0 0
        %2247 = vmatprep.subr.bf16.mxu0 0
        %2248 = vmatpush1.bf16.msra.mxu0 0
        %2249 = vmatprep.subr.bf16.mxu0 0
        %2250 = vmatpush1.bf16.msra.mxu0 0
        %2251 = vmatprep.subr.bf16.mxu0 0
        %2252 = vmatpush1.bf16.msra.mxu0 0
        %2253 = vmatprep.subr.bf16.mxu0 0
        %2254 = vmatpush1.bf16.msra.mxu0 0
        %2255 = vmatprep.subr.bf16.mxu0 0
        %2256 = vmatpush1.bf16.msra.mxu0 0
        %2257 = vmatprep.subr.bf16.mxu0 0
        %2258 = vmatpush1.bf16.msra.mxu0 0
        %2259 = vmatprep.subr.bf16.mxu0 0
        %2260 = vmatpush1.bf16.msra.mxu0 0
        %2261 = vmatprep.subr.bf16.mxu0 0
        %2262 = vmatpush1.bf16.msra.mxu0 0
        %2263 = vmatprep.subr.bf16.mxu0 0
        %2264 = vmatpush1.bf16.msra.mxu0 0
        %2265 = vmatprep.subr.bf16.mxu0 0
        %2266 = vmatpush1.bf16.msra.mxu0 0
        %2267 = vmatprep.subr.bf16.mxu0 0
        %2268 = vmatpush1.bf16.msra.mxu0 0
        %2269 = vmatprep.mubr.bf16.mxu0 0
        %2270 = vmatmul.mubr.bf16.gmra.mrb[0].mxu0 %v2235
        %v2271 = vpop.f32.mrb[0].mxu0
        %v2272 = vadd.f32 %v2207, %v2271
        %v2273 = vpop.f32.mrb[0].mxu0
        %v2274 = vpop.f32.mrb[0].mxu0
        %v2275 = vadd.f32 %v2207, %v2274
        %v2276 = vpop.f32.mrb[0].mxu0
        %2277 = vdwg.mxu0
        %v2278 = vadd.f32 %v2121, %v2272
        %v2279 = vadd.f32 %v2122, %v2275
        %v2280 = vsel %vm916, %v2278, 0.0
        %2281 = vadd.xlane.f32.xlu0 %v2280
        %v2282 = vpop.xlane.xlu0 %2281
        %v2283 = vsel %vm916, %v2279, 0.0
        %2284 = vadd.xlane.f32.xlu0 %v2283
        %v2285 = vpop.xlane.xlu0 %2284
        %v2286 = vmul.f32 %v2282, %v2084
        %v2287 = vmul.f32 %v2285, %v2084
        %v2288 = vsub.f32 %v2278, %v2286
        %v2289 = vsub.f32 %v2279, %v2287
        %v2290 = vmul.f32 %v2288, %v2288
        %v2291 = vmul.f32 %v2289, %v2289
        %v2292 = vsel %vm916, %v2290, 0.0
        %2293 = vadd.xlane.f32.xlu0 %v2292
        %v2294 = vpop.xlane.xlu0 %2293
        %v2295 = vsel %vm916, %v2291, 0.0
        %2296 = vadd.xlane.f32.xlu0 %v2295
        %v2297 = vpop.xlane.xlu0 %2296
        %v2298 = vmul.f32 %v2294, %v2084
        %v2299 = vmul.f32 %v2297, %v2084
        %v2300 = vadd.f32 %v2298, 1e-05
        %v2301 = vadd.f32 %v2299, 1e-05
        %v2302 = vrsqrt.pop %v2300
        %v2303 = vrsqrt.pop %v2301
        %v2304 = vmul.f32 %v2288, %v2302
        %v2305 = vmul.f32 %v2289, %v2303
        %v2306 = vld [vmem:[%s778] sm:$0x1]
        %v2308 = vlaneseq
        %v2309 = vshrl.u32 %v2308, 7
        %v2310 = vsub.s32 0, %v2309
        %v2311 = vrot.slane %v2306, %v2310
        %v2313 = vmul.f32 %v2304, %v2311
        %v2314 = vmul.f32 %v2305, %v2311
        %v2315 = vld [vmem:[%s786] sm:$0x1]
        %v2317 = vlaneseq
        %v2318 = vshrl.u32 %v2317, 7
        %v2319 = vsub.s32 0, %v2318
        %v2320 = vrot.slane %v2315, %v2319
        %v2322 = vadd.f32 %v2313, %v2320
        %v2323 = vadd.f32 %v2314, %v2320
        %2324 = vst.msk [vmem:[#allocation23] sm:$0xff] %vm916, %v2322
        %2325 = vst.msk [vmem:[#allocation23 + $0x8] sm:$0xff] %vm916, %v2323
        // Predicated region
        $region129: #{tpu_custom_call.1} parent=71 // pred_check
          %p2326 = pneg %p412
        $region130: #{tpu_custom_call.1} parent=71 // pred_check_branch
          %2328 = sbr.rel (%p2326) target = $region132
        $region131: #{tpu_custom_call.1} parent=71 // pred_region
          %s2329 = smul.u32 2, %s48
          %s2331 = ssub.s32 256, 256
          %2332 = vsyncadd [#allocation4], %s2331
          %s2333 = smul.addr %s2329, 128
          %s2334 = scalar_lea.hbm %s13, %s2333
          %s2335 = sshll.u32 [#allocation23], 4
          %s2336 = int_to_ptr.vmem [resolvable:$true] %s2335
          %2341 = dma.vmem_to_hbm [thread:$0]  %s2336, 256, %s2334, [#allocation4], 128, 128, 8
        $region132: #{tpu_custom_call.1} parent=71 // pred_fallthru
          _
        // Predicated region
        $region133: #{tpu_custom_call.1} parent=71 // pred_check
          %p2342 = pneg %p412
        $region134: #{tpu_custom_call.1} parent=71 // pred_check_branch
          %2344 = sbr.rel (%p2342) target = $region136
        $region135: #{tpu_custom_call.1} parent=71 // pred_region
          %2345 = dma.done [#allocation4], 256
        $region136: #{tpu_custom_call.1} parent=71 // pred_fallthru
          _
      $region72: #{tpu_custom_call.1} parent=5 // pred_fallthru
        _
      %p2346 = scmp.le.s32.totalorder 2, %s39
      // Predicated region
      $region137: #{tpu_custom_call.1} parent=5 // pred_check
        %p2347 = pneg %p2346
      $region138: #{tpu_custom_call.1} parent=5 // pred_check_branch
        %2349 = sbr.rel (%p2347) target = $region140
      $region139: #{tpu_custom_call.1} parent=5 // pred_region
        %s2350 = ssub.s32 %s39, 2
      $region140: #{tpu_custom_call.1} parent=5 // pred_fallthru
        _
    $region6: #{tpu_custom_call.1} parent=1 // loop_footer
      %s43 = sadd.s32 1, %s39
    $region7: #{tpu_custom_call.1} parent=1 // loop_footer_branch
      %38 = sbr.rel target = $region3
    $region8: #{tpu_custom_call.1} parent=1 // loop_exit
      _
    %2351 = vsyncpa [#allocation3], 1
    %s2352 = scalar_lea.sflag [#allocation3], 1
    %2353 = vsyncpa %s2352, 1
    %2354 = vsyncpa [#allocation6], 1
    %s2355 = scalar_lea.sflag [#allocation6], 1
    %2356 = vsyncpa %s2355, 1
    %2357 = vsyncpa [#allocation9], 1
    %s2358 = scalar_lea.sflag [#allocation9], 1
    %2359 = vsyncpa %s2358, 1
    %2360 = vsyncpa [#allocation12], 1
    %s2361 = scalar_lea.sflag [#allocation12], 1
    %2362 = vsyncpa %s2361, 1
    %2363 = vsyncpa [#allocation15], 1
    %s2364 = scalar_lea.sflag [#allocation15], 1
    %2365 = vsyncpa %s2364, 1
    %2366 = vsyncpa [#allocation18], 1
    %s2367 = scalar_lea.sflag [#allocation18], 1
    %2368 = vsyncpa %s2367, 1
    %2369 = vsyncpa [#allocation21], 1
    %s2370 = scalar_lea.sflag [#allocation21], 1
    %2371 = vsyncpa %s2370, 1
    %2372 = vsyncpa [#allocation4], 1
    %s2373 = scalar_lea.sflag [#allocation4], 1
    %2374 = vsyncpa %s2373, 1

</llo_original>
